<compile_context>
chip_gen: v7x
topology: tpu7x:2x2x1
jax: 0.10.0
libtpu: 0.0.40
codegen_flags: <defaults>
</compile_context>

<pallas_src>
import functools
import math

import jax
import jax.numpy as jnp
from jax.experimental import pallas as pl
from jax.experimental.pallas import tpu as pltpu

_HIGHEST = jax.lax.Precision.HIGHEST
_GELU_C = math.sqrt(2.0 / math.pi)


def _gelu_tanh(x):
    # F.gelu(..., approximate='tanh')
    return 0.5 * x * (1.0 + jnp.tanh(_GELU_C * (x + 0.044715 * x * x * x)))


def _round_up(x, m):
    return ((x + m - 1) // m) * m


def _row_tile(rows, dtype, cap=512):
    # Sublane packing: 8 rows/vreg for f32, 16 for bf16.  Large tiles amortize
    # the ~0.35us per-grid-step pipeline overhead on mem-bound kernels.
    base = 16 if dtype == jnp.bfloat16 else 8
    return min(cap, _round_up(rows, base))


def _pad_rows(x2d, tm):
    rows = x2d.shape[0]
    padded = _round_up(rows, tm)
    if padded != rows:
        x2d = jnp.pad(x2d, ((0, padded - rows), (0, 0)))
    return x2d


# ----------------------------------------------------------------------------
# Kernel 1: fused RMSNorm + q/k/v projections
# ----------------------------------------------------------------------------
def _rmsnorm_qkv_kernel(x_ref, s_ref, wq_ref, wk_ref, wv_ref,
                        q_ref, k_ref, v_ref, *, eps, inv_d):
    x = x_ref[...].astype(jnp.float32)                        # (tm, D)
    ms = jnp.sum(x * x, axis=-1, keepdims=True) * inv_d       # mean(x^2)
    normed = (x * jax.lax.rsqrt(ms + eps)) * s_ref[...]       # s = (1 + w), f32
    normed = normed.astype(x_ref.dtype)
    q_ref[...] = jnp.dot(normed, wq_ref[...], preferred_element_type=jnp.float32,
                         precision=_HIGHEST).astype(q_ref.dtype)
    k_ref[...] = jnp.dot(normed, wk_ref[...], preferred_element_type=jnp.float32,
                         precision=_HIGHEST).astype(k_ref.dtype)
    v_ref[...] = jnp.dot(normed, wv_ref[...], preferred_element_type=jnp.float32,
                         precision=_HIGHEST).astype(v_ref.dtype)


def fused_rmsnorm_qkv(x2d, norm_scale, wq, wk, wv, *, eps):
    rows, d = x2d.shape
    nq, nk, nv = wq.shape[1], wk.shape[1], wv.shape[1]
    tm = _row_tile(rows, x2d.dtype)
    xp = _pad_rows(x2d, tm)
    pr = xp.shape[0]
    kernel = functools.partial(_rmsnorm_qkv_kernel, eps=eps, inv_d=1.0 / d)
    q, k, v = pl.pallas_call(
        kernel,
        out_shape=(jax.ShapeDtypeStruct((pr, nq), x2d.dtype),
                   jax.ShapeDtypeStruct((pr, nk), x2d.dtype),
                   jax.ShapeDtypeStruct((pr, nv), x2d.dtype)),
        grid=(pr // tm,),
        in_specs=[pl.BlockSpec((tm, d), lambda i: (i, 0)),
                  pl.BlockSpec((1, d), lambda i: (0, 0)),
                  pl.BlockSpec((d, nq), lambda i: (0, 0)),
                  pl.BlockSpec((d, nk), lambda i: (0, 0)),
                  pl.BlockSpec((d, nv), lambda i: (0, 0))],
        out_specs=(pl.BlockSpec((tm, nq), lambda i: (i, 0)),
                   pl.BlockSpec((tm, nk), lambda i: (i, 0)),
                   pl.BlockSpec((tm, nv), lambda i: (i, 0))),
        compiler_params=pltpu.CompilerParams(dimension_semantics=("parallel",)),
    )(xp, norm_scale, wq, wk, wv)
    return q[:rows], k[:rows], v[:rows]


# ----------------------------------------------------------------------------
# Kernel 2: attention (RoPE + GQA + causal-masked fp32 softmax + @V)
#           operates on head-concatenated layouts; no wrapper transposes.
# ----------------------------------------------------------------------------
def _attention_kernel(q_ref, k_ref, v_ref, cos_ref, sin_ref, mask_ref, o_ref,
                      *, scale, num_heads, num_kv_heads, head_dim):
    cos = cos_ref[...].astype(jnp.float32)            # (S, Dh)
    sin = sin_ref[...].astype(jnp.float32)
    mask = mask_ref[...].astype(jnp.float32)          # (S, S)
    half = head_dim // 2
    groups = num_heads // num_kv_heads

    def rope(t):
        rot = jnp.concatenate([-t[:, half:], t[:, :half]], axis=-1)
        return t * cos + rot * sin

    # RoPE'd K and V per kv-head, computed once and shared by the query group.
    ks = [rope(k_ref[:, i * head_dim:(i + 1) * head_dim].astype(jnp.float32))
          for i in range(num_kv_heads)]
    vs = [v_ref[:, i * head_dim:(i + 1) * head_dim].astype(jnp.float32)
          for i in range(num_kv_heads)]

    outs = []
    for h in range(num_heads):
        kv = h // groups
        q = rope(q_ref[:, h * head_dim:(h + 1) * head_dim].astype(jnp.float32))
        # scores = q @ k^T * scale + mask  (NT matmul, fp32 accumulate)
        s = jax.lax.dot_general(q, ks[kv], (((1,), (1,)), ((), ())),
                                preferred_element_type=jnp.float32,
                                precision=_HIGHEST) * scale
        s = s + mask
        s = s - jnp.max(s, axis=-1, keepdims=True)
        p = jnp.exp(s)
        p = p / jnp.sum(p, axis=-1, keepdims=True)
        outs.append(jnp.dot(p, vs[kv], preferred_element_type=jnp.float32,
                            precision=_HIGHEST))
    # Single lane-dense store of all heads.
    o_ref[...] = jnp.concatenate(outs, axis=-1).astype(o_ref.dtype)


def attention(q3, k3, v3, cos, sin, mask, *, num_heads, num_kv_heads, head_dim,
              scale):
    b, s, qdim = q3.shape
    kvdim = k3.shape[-1]
    kernel = functools.partial(_attention_kernel, scale=scale,
                               num_heads=num_heads, num_kv_heads=num_kv_heads,
                               head_dim=head_dim)
    return pl.pallas_call(
        kernel,
        out_shape=jax.ShapeDtypeStruct((b, s, qdim), q3.dtype),
        grid=(b,),
        in_specs=[
            pl.BlockSpec((None, s, qdim), lambda bi: (bi, 0, 0)),
            pl.BlockSpec((None, s, kvdim), lambda bi: (bi, 0, 0)),
            pl.BlockSpec((None, s, kvdim), lambda bi: (bi, 0, 0)),
            pl.BlockSpec((None, s, head_dim), lambda bi: (bi, 0, 0)),
            pl.BlockSpec((None, s, head_dim), lambda bi: (bi, 0, 0)),
            pl.BlockSpec((None, None, s, s), lambda bi: (bi, 0, 0, 0)),
        ],
        out_specs=pl.BlockSpec((None, s, qdim), lambda bi: (bi, 0, 0)),
        compiler_params=pltpu.CompilerParams(dimension_semantics=("parallel",)),
    )(q3, k3, v3, cos, sin, mask)


# ----------------------------------------------------------------------------
# Kernel 3: o_proj + residual + post_attention_layernorm + gate/up +
#           gelu(tanh)*up + down_proj + residual   (all fused, row-tiled)
# ----------------------------------------------------------------------------
def _oproj_mlp_kernel(a_ref, r_ref, wo_ref, s_ref, wg_ref, wu_ref, wd_ref,
                      o_ref, *, eps, inv_d):
    # o_proj + first residual add; residual stream stays in fp32 VMEM.
    h = jnp.dot(a_ref[...], wo_ref[...], preferred_element_type=jnp.float32,
                precision=_HIGHEST) + r_ref[...].astype(jnp.float32)   # (tm, D)
    # post_attention_layernorm fused as prologue of the MLP matmuls.
    ms = jnp.sum(h * h, axis=-1, keepdims=True) * inv_d
    normed = ((h * jax.lax.rsqrt(ms + eps)) * s_ref[...]).astype(o_ref.dtype)
    # gate/up projections + gelu(tanh) * up
    gate = jnp.dot(normed, wg_ref[...], preferred_element_type=jnp.float32,
                   precision=_HIGHEST)
    up = jnp.dot(normed, wu_ref[...], preferred_element_type=jnp.float32,
                 precision=_HIGHEST)
    act = (_gelu_tanh(gate) * up).astype(o_ref.dtype)
    # down_proj + second residual add
    out = jnp.dot(act, wd_ref[...], preferred_element_type=jnp.float32,
                  precision=_HIGHEST) + h
    o_ref[...] = out.astype(o_ref.dtype)


def fused_oproj_mlp(attn2d, res2d, wo, norm_scale, wg, wu, wd, *, eps):
    rows, adim = attn2d.shape
    d = res2d.shape[1]
    inter = wg.shape[1]
    tm = _row_tile(rows, res2d.dtype)
    ap = _pad_rows(attn2d, tm)
    rp = _pad_rows(res2d, tm)
    pr = ap.shape[0]
    kernel = functools.partial(_oproj_mlp_kernel, eps=eps, inv_d=1.0 / d)
    out = pl.pallas_call(
        kernel,
        out_shape=jax.ShapeDtypeStruct((pr, d), res2d.dtype),
        grid=(pr // tm,),
        in_specs=[pl.BlockSpec((tm, adim), lambda i: (i, 0)),
                  pl.BlockSpec((tm, d), lambda i: (i, 0)),
                  pl.BlockSpec((adim, d), lambda i: (0, 0)),
                  pl.BlockSpec((1, d), lambda i: (0, 0)),
                  pl.BlockSpec((d, inter), lambda i: (0, 0)),
                  pl.BlockSpec((d, inter), lambda i: (0, 0)),
                  pl.BlockSpec((inter, d), lambda i: (0, 0))],
        out_specs=pl.BlockSpec((tm, d), lambda i: (i, 0)),
        compiler_params=pltpu.CompilerParams(dimension_semantics=("parallel",)),
    )(ap, rp, wo, norm_scale, wg, wu, wd)
    return out[:rows]


# ----------------------------------------------------------------------------
# Full decoder layer (forward, no kv_cache, eval-mode dropout)
# ----------------------------------------------------------------------------
def gemma_decoder_layer(x, attention_mask, position_ids, params, *,
                        num_heads, num_kv_heads, head_dim, eps=1e-6,
                        rope_theta=10000.0):
    b, s, d = x.shape
    rows = b * s
    x2d = x.reshape(rows, d)

    # Rotary cos/sin tables (tiny; built with plain jnp, consumed in-kernel).
    inv_freq = rope_theta ** (-jnp.arange(0, head_dim, 2, dtype=jnp.float32) / head_dim)
    freqs = position_ids.astype(jnp.float32)[:, :, None] * inv_freq[None, None, :]
    emb = jnp.concatenate([freqs, freqs], axis=-1)            # (B, S, Dh)
    cos = jnp.cos(emb).astype(x.dtype)
    sin = jnp.sin(emb).astype(x.dtype)

    # 1) fused input_layernorm + q/k/v projections (normed acts never hit HBM)
    q2d, k2d, v2d = fused_rmsnorm_qkv(
        x2d, params["input_ln_scale"], params["wq"], params["wk"], params["wv"],
        eps=eps)

    # 2) attention on the head-concatenated layout (only free contiguous
    #    reshapes in the wrapper — no transposes).
    q3 = q2d.reshape(b, s, num_heads * head_dim)
    k3 = k2d.reshape(b, s, num_kv_heads * head_dim)
    v3 = v2d.reshape(b, s, num_kv_heads * head_dim)
    attn3 = attention(q3, k3, v3, cos, sin, attention_mask,
                      num_heads=num_heads, num_kv_heads=num_kv_heads,
                      head_dim=head_dim, scale=1.0 / math.sqrt(head_dim))
    attn2d = attn3.reshape(rows, num_heads * head_dim)

    # 3) fused o_proj + residual + post_attention_layernorm + MLP + residual
    out2d = fused_oproj_mlp(attn2d, x2d, params["wo"], params["post_ln_scale"],
                            params["wg"], params["wu"], params["wd"], eps=eps)
    return out2d.reshape(b, s, d)


# ----------------------------------------------------------------------------
# Pure-JAX reference (mirrors the PyTorch module math)
# ----------------------------------------------------------------------------
def _reference_decoder_layer(x, mask, position_ids, w_in_ln, w_post_ln,
                             wq, wk, wv, wo, wg, wu, wd, *,
                             num_heads, num_kv_heads, head_dim, eps, rope_theta):
    def rmsnorm(h, w):
        hf = h.astype(jnp.float32)
        n = hf * jax.lax.rsqrt(jnp.mean(hf * hf, axis=-1, keepdims=True) + eps)
        return (n * (1.0 + w.astype(jnp.float32))).astype(h.dtype)

    b, s, d = x.shape
    residual = x
    h = rmsnorm(x, w_in_ln)
    q = jnp.dot(h, wq, precision=_HIGHEST).reshape(b, s, num_heads, head_dim).transpose(0, 2, 1, 3)
    k = jnp.dot(h, wk, precision=_HIGHEST).reshape(b, s, num_kv_heads, head_dim).transpose(0, 2, 1, 3)
    v = jnp.dot(h, wv, precision=_HIGHEST).reshape(b, s, num_kv_heads, head_dim).transpose(0, 2, 1, 3)

    inv_freq = rope_theta ** (-jnp.arange(0, head_dim, 2, dtype=jnp.float32) / head_dim)
    freqs = position_ids.astype(jnp.float32)[:, :, None] * inv_freq[None, None, :]
    emb = jnp.concatenate([freqs, freqs], axis=-1)
    cos = jnp.cos(emb).astype(x.dtype)[:, None, :, :]
    sin = jnp.sin(emb).astype(x.dtype)[:, None, :, :]

    def rot_half(t):
        return jnp.concatenate([-t[..., head_dim // 2:], t[..., :head_dim // 2]], axis=-1)

    q = q * cos + rot_half(q) * sin
    k = k * cos + rot_half(k) * sin

    groups = num_heads // num_kv_heads
    k = jnp.repeat(k, groups, axis=1)
    v = jnp.repeat(v, groups, axis=1)

    scores = jnp.einsum("bhqd,bhkd->bhqk", q, k, precision=_HIGHEST) / math.sqrt(head_dim)
    scores = scores + mask
    probs = jax.nn.softmax(scores.astype(jnp.float32), axis=-1).astype(q.dtype)
    attn = jnp.einsum("bhqk,bhkd->bhqd", probs, v, precision=_HIGHEST)
    attn = attn.transpose(0, 2, 1, 3).reshape(b, s, num_heads * head_dim)
    h = jnp.dot(attn, wo, precision=_HIGHEST) + residual

    residual = h
    hn = rmsnorm(h, w_post_ln)
    gate = jnp.dot(hn, wg, precision=_HIGHEST)
    up = jnp.dot(hn, wu, precision=_HIGHEST)
    out = jnp.dot(_gelu_tanh(gate) * up, wd, precision=_HIGHEST) + residual
    return out


if __name__ == "__main__":
    key = jax.random.PRNGKey(0)
    batch, seq, hidden = 2, 8, 32
    intermediate = 64
    num_heads, num_kv_heads, head_dim = 4, 2, 16
    eps = 1e-6
    rope_theta = 10000.0
    dtype = jnp.float32

    ks = jax.random.split(key, 10)
    x = jax.random.normal(ks[0], (batch, seq, hidden), dtype=dtype)

    def winit(k, shape):
        return (jax.random.normal(k, shape, dtype=jnp.float32)
                / math.sqrt(shape[0])).astype(dtype)

    # Norm weights (module inits to zeros; use small values to exercise (1+w))
    w_in_ln = 0.1 * jax.random.normal(ks[1], (hidden,), dtype=jnp.float32)
    w_post_ln = 0.1 * jax.random.normal(ks[2], (hidden,), dtype=jnp.float32)
    # Projection weights stored as (in, out) == nn.Linear weight transposed.
    wq = winit(ks[3], (hidden, num_heads * head_dim))
    wk = winit(ks[4], (hidden, num_kv_heads * head_dim))
    wv = winit(ks[5], (hidden, num_kv_heads * head_dim))
    wo = winit(ks[6], (num_heads * head_dim, hidden))
    wg = winit(ks[7], (hidden, intermediate))
    wu = winit(ks[8], (hidden, intermediate))
    wd = winit(ks[9], (intermediate, hidden))

    position_ids = jnp.broadcast_to(jnp.arange(seq, dtype=jnp.int32), (batch, seq))
    causal = jnp.tril(jnp.ones((seq, seq), dtype=bool))
    attention_mask = jnp.broadcast_to(
        jnp.where(causal, 0.0, -1e9).astype(dtype)[None, None, :, :],
        (batch, 1, seq, seq))

    params = {
        "input_ln_scale": (1.0 + w_in_ln).reshape(1, hidden).astype(jnp.float32),
        "post_ln_scale": (1.0 + w_post_ln).reshape(1, hidden).astype(jnp.float32),
        "wq": wq, "wk": wk, "wv": wv, "wo": wo, "wg": wg, "wu": wu, "wd": wd,
    }

    out = gemma_decoder_layer(x, attention_mask, position_ids, params,
                              num_heads=num_heads, num_kv_heads=num_kv_heads,
                              head_dim=head_dim, eps=eps, rope_theta=rope_theta)
    out = jax.block_until_ready(out)

    ref = _reference_decoder_layer(x, attention_mask, position_ids,
                                   w_in_ln, w_post_ln, wq, wk, wv, wo, wg, wu, wd,
                                   num_heads=num_heads, num_kv_heads=num_kv_heads,
                                   head_dim=head_dim, eps=eps, rope_theta=rope_theta)
    ref = jax.block_until_ready(ref)

    assert out.shape == x.shape and out.dtype == x.dtype
    max_err = float(jnp.max(jnp.abs(out - ref)))
    assert jnp.allclose(out, ref, atol=1e-3, rtol=1e-3), f"max_err={max_err}"
    print("KERNEL_OK")
</pallas_src>

<mosaic_0001>
module attributes {stable_mosaic.version = 11 : i64} {
  func.func @_rmsnorm_qkv_kernel(%arg0: i32, %arg1: memref<16x32xf32, #tpu.memory_space<vmem>>, %arg2: memref<1x32xf32, #tpu.memory_space<vmem>>, %arg3: memref<32x64xf32, #tpu.memory_space<vmem>>, %arg4: memref<32x32xf32, #tpu.memory_space<vmem>>, %arg5: memref<32x32xf32, #tpu.memory_space<vmem>>, %arg6: memref<16x64xf32, #tpu.memory_space<vmem>>, %arg7: memref<16x32xf32, #tpu.memory_space<vmem>>, %arg8: memref<16x32xf32, #tpu.memory_space<vmem>>) attributes {dimension_semantics = [#tpu.dimension_semantics<parallel>], iteration_bounds = array<i64: 1>, scalar_prefetch = 0 : i64, scratch_operands = 0 : i64, tpu.core_type = #tpu.core_type<tc>, window_params = [{transform_indices = @transform_0, window_bounds = array<i64: 16, 32>}, {pipeline_mode = #tpu.pipeline_mode<synchronous>, transform_indices = @transform_1, window_bounds = array<i64: 1, 32>}, {pipeline_mode = #tpu.pipeline_mode<synchronous>, transform_indices = @transform_2, window_bounds = array<i64: 32, 64>}, {pipeline_mode = #tpu.pipeline_mode<synchronous>, transform_indices = @transform_3, window_bounds = array<i64: 32, 32>}, {pipeline_mode = #tpu.pipeline_mode<synchronous>, transform_indices = @transform_4, window_bounds = array<i64: 32, 32>}, {transform_indices = @transform_5, window_bounds = array<i64: 16, 64>}, {transform_indices = @transform_6, window_bounds = array<i64: 16, 32>}, {transform_indices = @transform_7, window_bounds = array<i64: 16, 32>}]} {
    %c0 = arith.constant 0 : index
    %c0_0 = arith.constant 0 : index
    %0 = vector.load %arg1[%c0, %c0_0] : memref<16x32xf32, #tpu.memory_space<vmem>>, vector<16x32xf32>
    %1 = arith.mulf %0, %0 : vector<16x32xf32>
    %cst = arith.constant dense<0.000000e+00> : vector<16xf32>
    %2 = vector.multi_reduction <add>, %1, %cst [1] : vector<16x32xf32> to vector<16xf32>
    %3 = vector.shape_cast %2 : vector<16xf32> to vector<16x1xf32>
    %cst_1 = arith.constant 3.125000e-02 : f32
    %4 = vector.broadcast %cst_1 : f32 to vector<16x1xf32>
    %5 = arith.mulf %3, %4 : vector<16x1xf32>
    %cst_2 = arith.constant 9.99999997E-7 : f32
    %6 = vector.broadcast %cst_2 : f32 to vector<16x1xf32>
    %7 = arith.addf %5, %6 : vector<16x1xf32>
    %8 = math.rsqrt %7 : vector<16x1xf32>
    %9 = vector.broadcast %8 : vector<16x1xf32> to vector<16x32xf32>
    %10 = arith.mulf %0, %9 : vector<16x32xf32>
    %c0_3 = arith.constant 0 : index
    %c0_4 = arith.constant 0 : index
    %11 = vector.load %arg2[%c0_3, %c0_4] : memref<1x32xf32, #tpu.memory_space<vmem>>, vector<1x32xf32>
    %12 = vector.broadcast %11 : vector<1x32xf32> to vector<16x32xf32>
    %13 = arith.mulf %10, %12 : vector<16x32xf32>
    %c0_5 = arith.constant 0 : index
    %c0_6 = arith.constant 0 : index
    %14 = vector.load %arg3[%c0_5, %c0_6] : memref<32x64xf32, #tpu.memory_space<vmem>>, vector<32x64xf32>
    %cst_7 = arith.constant dense<0.000000e+00> : vector<16x64xf32>
    %15 = tpu.matmul %13, %14, %cst_7 {dimension_numbers = #tpu.dot_dimension_numbers<[1], [0], [0], [1], [0, 0, 1, 1], [], []>, precision = #tpu.contract_precision<fp32>} : vector<16x32xf32>, vector<32x64xf32>, vector<16x64xf32> -> vector<16x64xf32>
    %c0_8 = arith.constant 0 : index
    %c0_9 = arith.constant 0 : index
    %16 = vector.load %arg6[%c0_8, %c0_9] : memref<16x64xf32, #tpu.memory_space<vmem>>, vector<16x64xf32>
    tpu.vector_store %arg6[%c0_8, %c0_9], %15 {strides = array<i32>} : memref<16x64xf32, #tpu.memory_space<vmem>>, vector<16x64xf32>,
    %c0_10 = arith.constant 0 : index
    %c0_11 = arith.constant 0 : index
    %17 = vector.load %arg4[%c0_10, %c0_11] : memref<32x32xf32, #tpu.memory_space<vmem>>, vector<32x32xf32>
    %cst_12 = arith.constant dense<0.000000e+00> : vector<16x32xf32>
    %18 = tpu.matmul %13, %17, %cst_12 {dimension_numbers = #tpu.dot_dimension_numbers<[1], [0], [0], [1], [0, 0, 1, 1], [], []>, precision = #tpu.contract_precision<fp32>} : vector<16x32xf32>, vector<32x32xf32>, vector<16x32xf32> -> vector<16x32xf32>
    %c0_13 = arith.constant 0 : index
    %c0_14 = arith.constant 0 : index
    %19 = vector.load %arg7[%c0_13, %c0_14] : memref<16x32xf32, #tpu.memory_space<vmem>>, vector<16x32xf32>
    tpu.vector_store %arg7[%c0_13, %c0_14], %18 {strides = array<i32>} : memref<16x32xf32, #tpu.memory_space<vmem>>, vector<16x32xf32>,
    %c0_15 = arith.constant 0 : index
    %c0_16 = arith.constant 0 : index
    %20 = vector.load %arg5[%c0_15, %c0_16] : memref<32x32xf32, #tpu.memory_space<vmem>>, vector<32x32xf32>
    %cst_17 = arith.constant dense<0.000000e+00> : vector<16x32xf32>
    %21 = tpu.matmul %13, %20, %cst_17 {dimension_numbers = #tpu.dot_dimension_numbers<[1], [0], [0], [1], [0, 0, 1, 1], [], []>, precision = #tpu.contract_precision<fp32>} : vector<16x32xf32>, vector<32x32xf32>, vector<16x32xf32> -> vector<16x32xf32>
    %c0_18 = arith.constant 0 : index
    %c0_19 = arith.constant 0 : index
    %22 = vector.load %arg8[%c0_18, %c0_19] : memref<16x32xf32, #tpu.memory_space<vmem>>, vector<16x32xf32>
    tpu.vector_store %arg8[%c0_18, %c0_19], %21 {strides = array<i32>} : memref<16x32xf32, #tpu.memory_space<vmem>>, vector<16x32xf32>,
    return
  }
  func.func @transform_0(%arg0: i32) -> (i32, i32) {
    %c0_i32 = arith.constant 0 : i32
    %c0_i32_0 = arith.constant 0 : i32
    return %arg0, %c0_i32 : i32, i32
  }
  func.func @transform_1(%arg0: i32) -> (i32, i32) {
    %c0_i32 = arith.constant 0 : i32
    %c0_i32_0 = arith.constant 0 : i32
    %c0_i32_1 = arith.constant 0 : i32
    return %c0_i32, %c0_i32_0 : i32, i32
  }
  func.func @transform_2(%arg0: i32) -> (i32, i32) {
    %c0_i32 = arith.constant 0 : i32
    %c0_i32_0 = arith.constant 0 : i32
    %c0_i32_1 = arith.constant 0 : i32
    return %c0_i32, %c0_i32_0 : i32, i32
  }
  func.func @transform_3(%arg0: i32) -> (i32, i32) {
    %c0_i32 = arith.constant 0 : i32
    %c0_i32_0 = arith.constant 0 : i32
    %c0_i32_1 = arith.constant 0 : i32
    return %c0_i32, %c0_i32_0 : i32, i32
  }
  func.func @transform_4(%arg0: i32) -> (i32, i32) {
    %c0_i32 = arith.constant 0 : i32
    %c0_i32_0 = arith.constant 0 : i32
    %c0_i32_1 = arith.constant 0 : i32
    return %c0_i32, %c0_i32_0 : i32, i32
  }
  func.func @transform_5(%arg0: i32) -> (i32, i32) {
    %c0_i32 = arith.constant 0 : i32
    %c0_i32_0 = arith.constant 0 : i32
    return %arg0, %c0_i32 : i32, i32
  }
  func.func @transform_6(%arg0: i32) -> (i32, i32) {
    %c0_i32 = arith.constant 0 : i32
    %c0_i32_0 = arith.constant 0 : i32
    return %arg0, %c0_i32 : i32, i32
  }
  func.func @transform_7(%arg0: i32) -> (i32, i32) {
    %c0_i32 = arith.constant 0 : i32
    %c0_i32_0 = arith.constant 0 : i32
    return %arg0, %c0_i32 : i32, i32
  }
}

</mosaic_0001>

<llo_original>
// kernel: tpu_custom_call.1
$region0: #{tpu_custom_call.1}
  #allocation0 [shape = 'u32[]', space=smem, size = 0x4, offset = 0x4, fixed_abs, tag = 'smem constant byte address 0x4 - core index']
  #allocation1 [shape = 'u32[144,128]{1,0:T(1,128)}', space=vmem, size = 0x12000, scoped, tag = 'internal scratch']
  %s0 = inlined_call_operand.hbm [shape: f32[16,32], index: 0, kind: input, shape index: {}]
  %s1 = inlined_call_operand.vmem [shape: f32[1,32], index: 1, kind: input, shape index: {}]
  %s2 = inlined_call_operand.hbm [shape: f32[32,64], index: 2, kind: input, shape index: {}]
  %s3 = inlined_call_operand.hbm [shape: f32[32,32], index: 3, kind: input, shape index: {}]
  %s4 = inlined_call_operand.hbm [shape: f32[32,32], index: 4, kind: input, shape index: {}]
  %s5 = inlined_call_operand.hbm [shape: f32[16,64], index: 5, kind: output, shape index: {0}]
  %s6 = inlined_call_operand.hbm [shape: f32[16,32], index: 6, kind: output, shape index: {1}]
  %s7 = inlined_call_operand.hbm [shape: f32[16,32], index: 7, kind: output, shape index: {2}]
  %8 = xla_tuple %s5, %s6, %s7
  %s9 = sld [smem:[#allocation0]]
  $region62: #{tpu_custom_call.1} parent=0
    _
  %s11 = ssub.s32 1, %s9
  %s12 = scalar_select 0, %s11, %s9
  $region1: #{tpu_custom_call.1} parent=0
    #allocation2 [shape = 'u8[8192]{0}', space=vmem, size = 0x2000, scoped, tag = 'input window, operand 0, single buffered']
    #allocation3 [shape = 's32[1]{0}', space=sflag, size = 0x4, scoped, tag = 'scoped memory for tpu_custom_call.1']
    #allocation4 [shape = 's32[1]{0}', space=sflag, size = 0x4, scoped, tag = 'scoped memory for tpu_custom_call.1']
    #allocation5 [shape = 'u8[16384]{0}', space=vmem, size = 0x4000, scoped, tag = 'input window, operand 2, single buffered']
    #allocation6 [shape = 's32[1]{0}', space=sflag, size = 0x4, scoped, tag = 'scoped memory for tpu_custom_call.1']
    #allocation7 [shape = 'u8[16384]{0}', space=vmem, size = 0x4000, scoped, tag = 'input window, operand 3, single buffered']
    #allocation8 [shape = 'u8[16384]{0}', space=vmem, size = 0x4000, scoped, tag = 'input window, operand 4, single buffered']
    #allocation9 [shape = 's32[1]{0}', space=sflag, size = 0x4, scoped, tag = 'scoped memory for tpu_custom_call.1']
    #allocation10 [shape = 'u8[8192]{0}', space=vmem, size = 0x2000, scoped, tag = 'output window, operand 0, single buffered']
    #allocation11 [shape = 'u8[8192]{0}', space=vmem, size = 0x2000, scoped, tag = 'output window, operand 1, single buffered']
    #allocation12 [shape = 's32[1]{0}', space=sflag, size = 0x4, scoped, tag = 'scoped memory for tpu_custom_call.1']
    #allocation13 [shape = 'u8[8192]{0}', space=vmem, size = 0x2000, scoped, tag = 'output window, operand 2, single buffered']
    %13 = vsyncpa [#allocation3], 0
    %14 = vsyncpa [#allocation6], 0
    %15 = vsyncpa [#allocation9], 0
    %16 = vsyncpa [#allocation4], 0
    %17 = vsyncpa [#allocation12], 0
    // Predicated region
    $region2: #{tpu_custom_call.1} parent=1 // pred_check
      _
    $region3: #{tpu_custom_call.1} parent=1 // pred_check_branch
      %19 = sbr.rel (0) target = $region5
    $region4: #{tpu_custom_call.1} parent=1 // pred_region
      %s21 = ssub.s32 256, 256
      %22 = vsyncadd [#allocation3], %s21
      %s23 = sshll.u32 [#allocation2], 4
      %s24 = int_to_ptr.vmem [resolvable:$true] %s23
      %29 = dma.hbm_to_vmem [thread:$0]  %s0, 256, %s24, [#allocation3], 128, 128, 8
    $region5: #{tpu_custom_call.1} parent=1 // pred_fallthru
      _
    // Predicated region
    $region6: #{tpu_custom_call.1} parent=1 // pred_check
      _
    $region7: #{tpu_custom_call.1} parent=1 // pred_check_branch
      %31 = sbr.rel (0) target = $region9
    $region8: #{tpu_custom_call.1} parent=1 // pred_region
      _
    $region9: #{tpu_custom_call.1} parent=1 // pred_fallthru
      _
    // Predicated region
    $region10: #{tpu_custom_call.1} parent=1 // pred_check
      _
    $region11: #{tpu_custom_call.1} parent=1 // pred_check_branch
      %33 = sbr.rel (0) target = $region13
    $region12: #{tpu_custom_call.1} parent=1 // pred_region
      %s35 = ssub.s32 512, 512
      %36 = vsyncadd [#allocation6], %s35
      %s37 = sshll.u32 [#allocation5], 4
      %s38 = int_to_ptr.vmem [resolvable:$true] %s37
      %43 = dma.hbm_to_vmem [thread:$0]  %s2, 512, %s38, [#allocation6], 128, 128, 8
    $region13: #{tpu_custom_call.1} parent=1 // pred_fallthru
      _
    // Predicated region
    $region14: #{tpu_custom_call.1} parent=1 // pred_check
      _
    $region15: #{tpu_custom_call.1} parent=1 // pred_check_branch
      %45 = sbr.rel (0) target = $region17
    $region16: #{tpu_custom_call.1} parent=1 // pred_region
      %s47 = ssub.s32 512, 512
      %48 = vsyncadd [#allocation6], %s47
      %s49 = sshll.u32 [#allocation7], 4
      %s50 = int_to_ptr.vmem [resolvable:$true] %s49
      %55 = dma.hbm_to_vmem [thread:$0]  %s3, 512, %s50, [#allocation6], 128, 128, 8
    $region17: #{tpu_custom_call.1} parent=1 // pred_fallthru
      _
    // Predicated region
    $region18: #{tpu_custom_call.1} parent=1 // pred_check
      _
    $region19: #{tpu_custom_call.1} parent=1 // pred_check_branch
      %57 = sbr.rel (0) target = $region21
    $region20: #{tpu_custom_call.1} parent=1 // pred_region
      %s59 = ssub.s32 512, 512
      %60 = vsyncadd [#allocation9], %s59
      %s61 = sshll.u32 [#allocation8], 4
      %s62 = int_to_ptr.vmem [resolvable:$true] %s61
      %67 = dma.hbm_to_vmem [thread:$0]  %s4, 512, %s62, [#allocation9], 128, 128, 8
    $region21: #{tpu_custom_call.1} parent=1 // pred_fallthru
      _
    // Predicated region
    $region22: #{tpu_custom_call.1} parent=1 // pred_check
      _
    $region23: #{tpu_custom_call.1} parent=1 // pred_check_branch
      %69 = sbr.rel (0) target = $region25
    $region24: #{tpu_custom_call.1} parent=1 // pred_region
      %70 = dma.done [#allocation3], 256
    $region25: #{tpu_custom_call.1} parent=1 // pred_fallthru
      _
    // Predicated region
    $region26: #{tpu_custom_call.1} parent=1 // pred_check
      _
    $region27: #{tpu_custom_call.1} parent=1 // pred_check_branch
      %72 = sbr.rel (0) target = $region29
    $region28: #{tpu_custom_call.1} parent=1 // pred_region
      %73 = dma.done [#allocation6], 512
    $region29: #{tpu_custom_call.1} parent=1 // pred_fallthru
      _
    // Predicated region
    $region30: #{tpu_custom_call.1} parent=1 // pred_check
      _
    $region31: #{tpu_custom_call.1} parent=1 // pred_check_branch
      %75 = sbr.rel (0) target = $region33
    $region32: #{tpu_custom_call.1} parent=1 // pred_region
      %76 = dma.done [#allocation6], 512
    $region33: #{tpu_custom_call.1} parent=1 // pred_fallthru
      _
    // Predicated region
    $region34: #{tpu_custom_call.1} parent=1 // pred_check
      _
    $region35: #{tpu_custom_call.1} parent=1 // pred_check_branch
      %78 = sbr.rel (0) target = $region37
    $region36: #{tpu_custom_call.1} parent=1 // pred_region
      %79 = dma.done [#allocation9], 512
    $region37: #{tpu_custom_call.1} parent=1 // pred_fallthru
      _
    %v80 = vld [vmem:[#allocation2] sm:$0xff]
    %v81 = vld [vmem:[#allocation2 + $0x8] sm:$0xff]
    %v82 = vmul.f32 %v80, %v80
    %v83 = vmul.f32 %v81, %v81
    %vm84 = vcmask 261120
    %v85 = vsel %vm84, %v82, 0.0
    %86 = vadd.xlane.f32.xlu0 %v85
    %v87 = vpop.xlane.xlu0 %86
    %v88 = vsel %vm84, %v83, 0.0
    %89 = vadd.xlane.f32.xlu0 %v88
    %v90 = vpop.xlane.xlu0 %89
    %v91 = vmul.f32 %v87, 0.03125
    %v92 = vmul.f32 %v90, 0.03125
    %v93 = vadd.f32 %v91, 1e-06
    %v94 = vadd.f32 %v92, 1e-06
    %v95 = vrsqrt.pop %v93
    %v96 = vrsqrt.pop %v94
    %v97 = vmul.f32 %v80, %v95
    %v98 = vmul.f32 %v81, %v96
    %v99 = vld [vmem:[%s1] sm:$0x1]
    %v101 = vlaneseq
    %v102 = vshrl.u32 %v101, 7
    %v103 = vsub.s32 0, %v102
    %v104 = vrot.slane %v99, %v103
    %v106 = vmul.f32 %v97, %v104
    %v107 = vmul.f32 %v98, %v104
    %v108 = vld [vmem:[#allocation5] sm:$0xff]
    %v109 = vld [vmem:[#allocation5 + $0x8] sm:$0xff]
    %v110 = vld [vmem:[#allocation5 + $0x10] sm:$0xff]
    %v111 = vld [vmem:[#allocation5 + $0x18] sm:$0xff]
    %v113 = vsel %vm84, %v106, 0
    %v116 = vsel %vm84, %v107, 0
    %118 = vmatprep.subr.mxu0 0.0
    %v119 = vand.u32 %v108, 4294901760
    %120 = vmatpush1.msra.mxu0 %v119
    %121 = vmatprep.subr.mxu0 0.0
    %v122 = vand.u32 %v109, 4294901760
    %123 = vmatpush1.msra.mxu0 %v122
    %124 = vmatprep.subr.mxu0 0.0
    %v125 = vand.u32 %v110, 4294901760
    %126 = vmatpush1.msra.mxu0 %v125
    %127 = vmatprep.subr.mxu0 0.0
    %v128 = vand.u32 %v111, 4294901760
    %129 = vmatpush1.msra.mxu0 %v128
    %130 = vmatprep.subr.mxu0 0.0
    %131 = vmatpush1.msra.mxu0 0.0
    %132 = vmatprep.subr.mxu0 0.0
    %133 = vmatpush1.msra.mxu0 0.0
    %134 = vmatprep.subr.mxu0 0.0
    %135 = vmatpush1.msra.mxu0 0.0
    %136 = vmatprep.subr.mxu0 0.0
    %137 = vmatpush1.msra.mxu0 0.0
    %138 = vmatprep.subr.mxu0 0.0
    %139 = vmatpush1.msra.mxu0 0.0
    %140 = vmatprep.subr.mxu0 0.0
    %141 = vmatpush1.msra.mxu0 0.0
    %142 = vmatprep.subr.mxu0 0.0
    %143 = vmatpush1.msra.mxu0 0.0
    %144 = vmatprep.subr.mxu0 0.0
    %145 = vmatpush1.msra.mxu0 0.0
    %146 = vmatprep.subr.mxu0 0.0
    %147 = vmatpush1.msra.mxu0 0.0
    %148 = vmatprep.subr.mxu0 0.0
    %149 = vmatpush1.msra.mxu0 0.0
    %150 = vmatprep.subr.mxu0 0.0
    %151 = vmatpush1.msra.mxu0 0.0
    %152 = vmatprep.subr.mxu0 0.0
    %153 = vmatpush1.msra.mxu0 0.0
    %154 = vmatprep.subr.mxu0 0.0
    %155 = vmatpush1.msra.mxu0 0.0
    %156 = vmatprep.subr.mxu0 0.0
    %157 = vmatpush1.msra.mxu0 0.0
    %158 = vmatprep.subr.mxu0 0.0
    %159 = vmatpush1.msra.mxu0 0.0
    %160 = vmatprep.subr.mxu0 0.0
    %161 = vmatpush1.msra.mxu0 0.0
    %162 = vmatprep.subr.mxu0 0.0
    %163 = vmatpush1.msra.mxu0 0.0
    %164 = vmatprep.subr.mxu0 0.0
    %165 = vmatpush1.msra.mxu0 0.0
    %166 = vmatprep.subr.mxu0 0.0
    %167 = vmatpush1.msra.mxu0 0.0
    %168 = vmatprep.subr.mxu0 0.0
    %169 = vmatpush1.msra.mxu0 0.0
    %170 = vmatprep.subr.mxu0 0.0
    %171 = vmatpush1.msra.mxu0 0.0
    %172 = vmatprep.subr.mxu0 0.0
    %173 = vmatpush1.msra.mxu0 0.0
    %174 = vmatprep.subr.mxu0 0.0
    %175 = vmatpush1.msra.mxu0 0.0
    %176 = vmatprep.subr.mxu0 0.0
    %177 = vmatpush1.msra.mxu0 0.0
    %178 = vmatprep.subr.mxu0 0.0
    %179 = vmatpush1.msra.mxu0 0.0
    %180 = vmatprep.subr.mxu0 0.0
    %181 = vmatpush1.msra.mxu0 0.0
    %182 = vmatprep.subr.mxu0 0.0
    %183 = vmatpush1.msra.mxu0 0.0
    %184 = vmatprep.subr.mxu0 0.0
    %185 = vmatpush1.msra.mxu0 0.0
    %186 = vmatprep.mubr.f32.mxu0 0.0
    %v187 = vand.u32 %v113, 4294901760
    %v188 = vsub.f32 %v113, %v187
    %v189 = vand.u32 %v188, 4294901760
    %v190 = vsub.f32 %v188, %v189
    %v191 = vand.u32 %v190, 4294901760
    %192 = vmatmul.mubr.f32.gmra.mrb[0].mxu0 %v191
    %v193 = vpop.f32.mrb[0].mxu0
    %v194 = vadd.f32 0.0, %v193
    %v195 = vpop.f32.mrb[0].mxu0
    %196 = vmatprep.mubr.f32.mxu0 0.0
    %v197 = vand.u32 %v116, 4294901760
    %v198 = vsub.f32 %v116, %v197
    %v199 = vand.u32 %v198, 4294901760
    %v200 = vsub.f32 %v198, %v199
    %v201 = vand.u32 %v200, 4294901760
    %202 = vmatmul.mubr.f32.gmra.mrb[0].mxu0 %v201
    %v203 = vpop.f32.mrb[0].mxu0
    %v204 = vadd.f32 0.0, %v203
    %v205 = vpop.f32.mrb[0].mxu0
    %206 = vdwg.mxu0
    %207 = vmatprep.subr.mxu0 0.0
    %v208 = vand.u32 %v108, 4294901760
    %v209 = vsub.f32 %v108, %v208
    %v210 = vand.u32 %v209, 4294901760
    %v211 = vsub.f32 %v209, %v210
    %v212 = vand.u32 %v211, 4294901760
    %213 = vmatpush1.msra.mxu0 %v212
    %214 = vmatprep.subr.mxu0 0.0
    %v215 = vand.u32 %v109, 4294901760
    %v216 = vsub.f32 %v109, %v215
    %v217 = vand.u32 %v216, 4294901760
    %v218 = vsub.f32 %v216, %v217
    %v219 = vand.u32 %v218, 4294901760
    %220 = vmatpush1.msra.mxu0 %v219
    %221 = vmatprep.subr.mxu0 0.0
    %v222 = vand.u32 %v110, 4294901760
    %v223 = vsub.f32 %v110, %v222
    %v224 = vand.u32 %v223, 4294901760
    %v225 = vsub.f32 %v223, %v224
    %v226 = vand.u32 %v225, 4294901760
    %227 = vmatpush1.msra.mxu0 %v226
    %228 = vmatprep.subr.mxu0 0.0
    %v229 = vand.u32 %v111, 4294901760
    %v230 = vsub.f32 %v111, %v229
    %v231 = vand.u32 %v230, 4294901760
    %v232 = vsub.f32 %v230, %v231
    %v233 = vand.u32 %v232, 4294901760
    %234 = vmatpush1.msra.mxu0 %v233
    %235 = vmatprep.subr.mxu0 0.0
    %236 = vmatpush1.msra.mxu0 0.0
    %237 = vmatprep.subr.mxu0 0.0
    %238 = vmatpush1.msra.mxu0 0.0
    %239 = vmatprep.subr.mxu0 0.0
    %240 = vmatpush1.msra.mxu0 0.0
    %241 = vmatprep.subr.mxu0 0.0
    %242 = vmatpush1.msra.mxu0 0.0
    %243 = vmatprep.subr.mxu0 0.0
    %244 = vmatpush1.msra.mxu0 0.0
    %245 = vmatprep.subr.mxu0 0.0
    %246 = vmatpush1.msra.mxu0 0.0
    %247 = vmatprep.subr.mxu0 0.0
    %248 = vmatpush1.msra.mxu0 0.0
    %249 = vmatprep.subr.mxu0 0.0
    %250 = vmatpush1.msra.mxu0 0.0
    %251 = vmatprep.subr.mxu0 0.0
    %252 = vmatpush1.msra.mxu0 0.0
    %253 = vmatprep.subr.mxu0 0.0
    %254 = vmatpush1.msra.mxu0 0.0
    %255 = vmatprep.subr.mxu0 0.0
    %256 = vmatpush1.msra.mxu0 0.0
    %257 = vmatprep.subr.mxu0 0.0
    %258 = vmatpush1.msra.mxu0 0.0
    %259 = vmatprep.subr.mxu0 0.0
    %260 = vmatpush1.msra.mxu0 0.0
    %261 = vmatprep.subr.mxu0 0.0
    %262 = vmatpush1.msra.mxu0 0.0
    %263 = vmatprep.subr.mxu0 0.0
    %264 = vmatpush1.msra.mxu0 0.0
    %265 = vmatprep.subr.mxu0 0.0
    %266 = vmatpush1.msra.mxu0 0.0
    %267 = vmatprep.subr.mxu0 0.0
    %268 = vmatpush1.msra.mxu0 0.0
    %269 = vmatprep.subr.mxu0 0.0
    %270 = vmatpush1.msra.mxu0 0.0
    %271 = vmatprep.subr.mxu0 0.0
    %272 = vmatpush1.msra.mxu0 0.0
    %273 = vmatprep.subr.mxu0 0.0
    %274 = vmatpush1.msra.mxu0 0.0
    %275 = vmatprep.subr.mxu0 0.0
    %276 = vmatpush1.msra.mxu0 0.0
    %277 = vmatprep.subr.mxu0 0.0
    %278 = vmatpush1.msra.mxu0 0.0
    %279 = vmatprep.subr.mxu0 0.0
    %280 = vmatpush1.msra.mxu0 0.0
    %281 = vmatprep.subr.mxu0 0.0
    %282 = vmatpush1.msra.mxu0 0.0
    %283 = vmatprep.subr.mxu0 0.0
    %284 = vmatpush1.msra.mxu0 0.0
    %285 = vmatprep.subr.mxu0 0.0
    %286 = vmatpush1.msra.mxu0 0.0
    %287 = vmatprep.subr.mxu0 0.0
    %288 = vmatpush1.msra.mxu0 0.0
    %289 = vmatprep.subr.mxu0 0.0
    %290 = vmatpush1.msra.mxu0 0.0
    %291 = vmatprep.mubr.f32.mxu0 0.0
    %v292 = vand.u32 %v113, 4294901760
    %293 = vmatmul.mubr.f32.gmra.mrb[0].mxu0 %v292
    %v294 = vpop.f32.mrb[0].mxu0
    %v295 = vadd.f32 %v194, %v294
    %v296 = vpop.f32.mrb[0].mxu0
    %297 = vmatprep.mubr.f32.mxu0 0.0
    %v298 = vand.u32 %v116, 4294901760
    %299 = vmatmul.mubr.f32.gmra.mrb[0].mxu0 %v298
    %v300 = vpop.f32.mrb[0].mxu0
    %v301 = vadd.f32 %v204, %v300
    %v302 = vpop.f32.mrb[0].mxu0
    %303 = vdwg.mxu0
    %304 = vmatprep.subr.mxu0 0.0
    %v305 = vand.u32 %v108, 4294901760
    %v306 = vsub.f32 %v108, %v305
    %307 = vmatpush1.msra.mxu0 %v306
    %308 = vmatprep.subr.mxu0 0.0
    %v309 = vand.u32 %v109, 4294901760
    %v310 = vsub.f32 %v109, %v309
    %311 = vmatpush1.msra.mxu0 %v310
    %312 = vmatprep.subr.mxu0 0.0
    %v313 = vand.u32 %v110, 4294901760
    %v314 = vsub.f32 %v110, %v313
    %315 = vmatpush1.msra.mxu0 %v314
    %316 = vmatprep.subr.mxu0 0.0
    %v317 = vand.u32 %v111, 4294901760
    %v318 = vsub.f32 %v111, %v317
    %319 = vmatpush1.msra.mxu0 %v318
    %320 = vmatprep.subr.mxu0 0.0
    %321 = vmatpush1.msra.mxu0 0.0
    %322 = vmatprep.subr.mxu0 0.0
    %323 = vmatpush1.msra.mxu0 0.0
    %324 = vmatprep.subr.mxu0 0.0
    %325 = vmatpush1.msra.mxu0 0.0
    %326 = vmatprep.subr.mxu0 0.0
    %327 = vmatpush1.msra.mxu0 0.0
    %328 = vmatprep.subr.mxu0 0.0
    %329 = vmatpush1.msra.mxu0 0.0
    %330 = vmatprep.subr.mxu0 0.0
    %331 = vmatpush1.msra.mxu0 0.0
    %332 = vmatprep.subr.mxu0 0.0
    %333 = vmatpush1.msra.mxu0 0.0
    %334 = vmatprep.subr.mxu0 0.0
    %335 = vmatpush1.msra.mxu0 0.0
    %336 = vmatprep.subr.mxu0 0.0
    %337 = vmatpush1.msra.mxu0 0.0
    %338 = vmatprep.subr.mxu0 0.0
    %339 = vmatpush1.msra.mxu0 0.0
    %340 = vmatprep.subr.mxu0 0.0
    %341 = vmatpush1.msra.mxu0 0.0
    %342 = vmatprep.subr.mxu0 0.0
    %343 = vmatpush1.msra.mxu0 0.0
    %344 = vmatprep.subr.mxu0 0.0
    %345 = vmatpush1.msra.mxu0 0.0
    %346 = vmatprep.subr.mxu0 0.0
    %347 = vmatpush1.msra.mxu0 0.0
    %348 = vmatprep.subr.mxu0 0.0
    %349 = vmatpush1.msra.mxu0 0.0
    %350 = vmatprep.subr.mxu0 0.0
    %351 = vmatpush1.msra.mxu0 0.0
    %352 = vmatprep.subr.mxu0 0.0
    %353 = vmatpush1.msra.mxu0 0.0
    %354 = vmatprep.subr.mxu0 0.0
    %355 = vmatpush1.msra.mxu0 0.0
    %356 = vmatprep.subr.mxu0 0.0
    %357 = vmatpush1.msra.mxu0 0.0
    %358 = vmatprep.subr.mxu0 0.0
    %359 = vmatpush1.msra.mxu0 0.0
    %360 = vmatprep.subr.mxu0 0.0
    %361 = vmatpush1.msra.mxu0 0.0
    %362 = vmatprep.subr.mxu0 0.0
    %363 = vmatpush1.msra.mxu0 0.0
    %364 = vmatprep.subr.mxu0 0.0
    %365 = vmatpush1.msra.mxu0 0.0
    %366 = vmatprep.subr.mxu0 0.0
    %367 = vmatpush1.msra.mxu0 0.0
    %368 = vmatprep.subr.mxu0 0.0
    %369 = vmatpush1.msra.mxu0 0.0
    %370 = vmatprep.subr.mxu0 0.0
    %371 = vmatpush1.msra.mxu0 0.0
    %372 = vmatprep.subr.mxu0 0.0
    %373 = vmatpush1.msra.mxu0 0.0
    %374 = vmatprep.subr.mxu0 0.0
    %375 = vmatpush1.msra.mxu0 0.0
    %376 = vmatprep.mubr.f32.mxu0 0.0
    %v377 = vand.u32 %v113, 4294901760
    %v378 = vsub.f32 %v113, %v377
    %379 = vmatmul.mubr.f32.gmra.mrb[0].mxu0 %v378
    %v380 = vpop.f32.mrb[0].mxu0
    %v381 = vadd.f32 %v295, %v380
    %v382 = vpop.f32.mrb[0].mxu0
    %383 = vmatprep.mubr.f32.mxu0 0.0
    %v384 = vand.u32 %v116, 4294901760
    %v385 = vsub.f32 %v116, %v384
    %386 = vmatmul.mubr.f32.gmra.mrb[0].mxu0 %v385
    %v387 = vpop.f32.mrb[0].mxu0
    %v388 = vadd.f32 %v301, %v387
    %v389 = vpop.f32.mrb[0].mxu0
    %390 = vdwg.mxu0
    %391 = vmatprep.subr.mxu0 0.0
    %v392 = vand.u32 %v108, 4294901760
    %393 = vmatpush1.msra.mxu0 %v392
    %394 = vmatprep.subr.mxu0 0.0
    %v395 = vand.u32 %v109, 4294901760
    %396 = vmatpush1.msra.mxu0 %v395
    %397 = vmatprep.subr.mxu0 0.0
    %v398 = vand.u32 %v110, 4294901760
    %399 = vmatpush1.msra.mxu0 %v398
    %400 = vmatprep.subr.mxu0 0.0
    %v401 = vand.u32 %v111, 4294901760
    %402 = vmatpush1.msra.mxu0 %v401
    %403 = vmatprep.subr.mxu0 0.0
    %404 = vmatpush1.msra.mxu0 0.0
    %405 = vmatprep.subr.mxu0 0.0
    %406 = vmatpush1.msra.mxu0 0.0
    %407 = vmatprep.subr.mxu0 0.0
    %408 = vmatpush1.msra.mxu0 0.0
    %409 = vmatprep.subr.mxu0 0.0
    %410 = vmatpush1.msra.mxu0 0.0
    %411 = vmatprep.subr.mxu0 0.0
    %412 = vmatpush1.msra.mxu0 0.0
    %413 = vmatprep.subr.mxu0 0.0
    %414 = vmatpush1.msra.mxu0 0.0
    %415 = vmatprep.subr.mxu0 0.0
    %416 = vmatpush1.msra.mxu0 0.0
    %417 = vmatprep.subr.mxu0 0.0
    %418 = vmatpush1.msra.mxu0 0.0
    %419 = vmatprep.subr.mxu0 0.0
    %420 = vmatpush1.msra.mxu0 0.0
    %421 = vmatprep.subr.mxu0 0.0
    %422 = vmatpush1.msra.mxu0 0.0
    %423 = vmatprep.subr.mxu0 0.0
    %424 = vmatpush1.msra.mxu0 0.0
    %425 = vmatprep.subr.mxu0 0.0
    %426 = vmatpush1.msra.mxu0 0.0
    %427 = vmatprep.subr.mxu0 0.0
    %428 = vmatpush1.msra.mxu0 0.0
    %429 = vmatprep.subr.mxu0 0.0
    %430 = vmatpush1.msra.mxu0 0.0
    %431 = vmatprep.subr.mxu0 0.0
    %432 = vmatpush1.msra.mxu0 0.0
    %433 = vmatprep.subr.mxu0 0.0
    %434 = vmatpush1.msra.mxu0 0.0
    %435 = vmatprep.subr.mxu0 0.0
    %436 = vmatpush1.msra.mxu0 0.0
    %437 = vmatprep.subr.mxu0 0.0
    %438 = vmatpush1.msra.mxu0 0.0
    %439 = vmatprep.subr.mxu0 0.0
    %440 = vmatpush1.msra.mxu0 0.0
    %441 = vmatprep.subr.mxu0 0.0
    %442 = vmatpush1.msra.mxu0 0.0
    %443 = vmatprep.subr.mxu0 0.0
    %444 = vmatpush1.msra.mxu0 0.0
    %445 = vmatprep.subr.mxu0 0.0
    %446 = vmatpush1.msra.mxu0 0.0
    %447 = vmatprep.subr.mxu0 0.0
    %448 = vmatpush1.msra.mxu0 0.0
    %449 = vmatprep.subr.mxu0 0.0
    %450 = vmatpush1.msra.mxu0 0.0
    %451 = vmatprep.subr.mxu0 0.0
    %452 = vmatpush1.msra.mxu0 0.0
    %453 = vmatprep.subr.mxu0 0.0
    %454 = vmatpush1.msra.mxu0 0.0
    %455 = vmatprep.subr.mxu0 0.0
    %456 = vmatpush1.msra.mxu0 0.0
    %457 = vmatprep.subr.mxu0 0.0
    %458 = vmatpush1.msra.mxu0 0.0
    %459 = vmatprep.mubr.f32.mxu0 0.0
    %v460 = vand.u32 %v113, 4294901760
    %v461 = vsub.f32 %v113, %v460
    %v462 = vand.u32 %v461, 4294901760
    %463 = vmatmul.mubr.f32.gmra.mrb[0].mxu0 %v462
    %v464 = vpop.f32.mrb[0].mxu0
    %v465 = vadd.f32 %v381, %v464
    %v466 = vpop.f32.mrb[0].mxu0
    %467 = vmatprep.mubr.f32.mxu0 0.0
    %v468 = vand.u32 %v116, 4294901760
    %v469 = vsub.f32 %v116, %v468
    %v470 = vand.u32 %v469, 4294901760
    %471 = vmatmul.mubr.f32.gmra.mrb[0].mxu0 %v470
    %v472 = vpop.f32.mrb[0].mxu0
    %v473 = vadd.f32 %v388, %v472
    %v474 = vpop.f32.mrb[0].mxu0
    %475 = vdwg.mxu0
    %476 = vmatprep.subr.mxu0 0.0
    %v477 = vand.u32 %v108, 4294901760
    %v478 = vsub.f32 %v108, %v477
    %v479 = vand.u32 %v478, 4294901760
    %480 = vmatpush1.msra.mxu0 %v479
    %481 = vmatprep.subr.mxu0 0.0
    %v482 = vand.u32 %v109, 4294901760
    %v483 = vsub.f32 %v109, %v482
    %v484 = vand.u32 %v483, 4294901760
    %485 = vmatpush1.msra.mxu0 %v484
    %486 = vmatprep.subr.mxu0 0.0
    %v487 = vand.u32 %v110, 4294901760
    %v488 = vsub.f32 %v110, %v487
    %v489 = vand.u32 %v488, 4294901760
    %490 = vmatpush1.msra.mxu0 %v489
    %491 = vmatprep.subr.mxu0 0.0
    %v492 = vand.u32 %v111, 4294901760
    %v493 = vsub.f32 %v111, %v492
    %v494 = vand.u32 %v493, 4294901760
    %495 = vmatpush1.msra.mxu0 %v494
    %496 = vmatprep.subr.mxu0 0.0
    %497 = vmatpush1.msra.mxu0 0.0
    %498 = vmatprep.subr.mxu0 0.0
    %499 = vmatpush1.msra.mxu0 0.0
    %500 = vmatprep.subr.mxu0 0.0
    %501 = vmatpush1.msra.mxu0 0.0
    %502 = vmatprep.subr.mxu0 0.0
    %503 = vmatpush1.msra.mxu0 0.0
    %504 = vmatprep.subr.mxu0 0.0
    %505 = vmatpush1.msra.mxu0 0.0
    %506 = vmatprep.subr.mxu0 0.0
    %507 = vmatpush1.msra.mxu0 0.0
    %508 = vmatprep.subr.mxu0 0.0
    %509 = vmatpush1.msra.mxu0 0.0
    %510 = vmatprep.subr.mxu0 0.0
    %511 = vmatpush1.msra.mxu0 0.0
    %512 = vmatprep.subr.mxu0 0.0
    %513 = vmatpush1.msra.mxu0 0.0
    %514 = vmatprep.subr.mxu0 0.0
    %515 = vmatpush1.msra.mxu0 0.0
    %516 = vmatprep.subr.mxu0 0.0
    %517 = vmatpush1.msra.mxu0 0.0
    %518 = vmatprep.subr.mxu0 0.0
    %519 = vmatpush1.msra.mxu0 0.0
    %520 = vmatprep.subr.mxu0 0.0
    %521 = vmatpush1.msra.mxu0 0.0
    %522 = vmatprep.subr.mxu0 0.0
    %523 = vmatpush1.msra.mxu0 0.0
    %524 = vmatprep.subr.mxu0 0.0
    %525 = vmatpush1.msra.mxu0 0.0
    %526 = vmatprep.subr.mxu0 0.0
    %527 = vmatpush1.msra.mxu0 0.0
    %528 = vmatprep.subr.mxu0 0.0
    %529 = vmatpush1.msra.mxu0 0.0
    %530 = vmatprep.subr.mxu0 0.0
    %531 = vmatpush1.msra.mxu0 0.0
    %532 = vmatprep.subr.mxu0 0.0
    %533 = vmatpush1.msra.mxu0 0.0
    %534 = vmatprep.subr.mxu0 0.0
    %535 = vmatpush1.msra.mxu0 0.0
    %536 = vmatprep.subr.mxu0 0.0
    %537 = vmatpush1.msra.mxu0 0.0
    %538 = vmatprep.subr.mxu0 0.0
    %539 = vmatpush1.msra.mxu0 0.0
    %540 = vmatprep.subr.mxu0 0.0
    %541 = vmatpush1.msra.mxu0 0.0
    %542 = vmatprep.subr.mxu0 0.0
    %543 = vmatpush1.msra.mxu0 0.0
    %544 = vmatprep.subr.mxu0 0.0
    %545 = vmatpush1.msra.mxu0 0.0
    %546 = vmatprep.subr.mxu0 0.0
    %547 = vmatpush1.msra.mxu0 0.0
    %548 = vmatprep.subr.mxu0 0.0
    %549 = vmatpush1.msra.mxu0 0.0
    %550 = vmatprep.subr.mxu0 0.0
    %551 = vmatpush1.msra.mxu0 0.0
    %552 = vmatprep.mubr.f32.mxu0 0.0
    %v553 = vand.u32 %v113, 4294901760
    %554 = vmatmul.mubr.f32.gmra.mrb[0].mxu0 %v553
    %v555 = vpop.f32.mrb[0].mxu0
    %v556 = vadd.f32 %v465, %v555
    %v557 = vpop.f32.mrb[0].mxu0
    %558 = vmatprep.mubr.f32.mxu0 0.0
    %v559 = vand.u32 %v116, 4294901760
    %560 = vmatmul.mubr.f32.gmra.mrb[0].mxu0 %v559
    %v561 = vpop.f32.mrb[0].mxu0
    %v562 = vadd.f32 %v473, %v561
    %v563 = vpop.f32.mrb[0].mxu0
    %564 = vdwg.mxu0
    %565 = vmatprep.subr.mxu0 0.0
    %v566 = vand.u32 %v108, 4294901760
    %567 = vmatpush1.msra.mxu0 %v566
    %568 = vmatprep.subr.mxu0 0.0
    %v569 = vand.u32 %v109, 4294901760
    %570 = vmatpush1.msra.mxu0 %v569
    %571 = vmatprep.subr.mxu0 0.0
    %v572 = vand.u32 %v110, 4294901760
    %573 = vmatpush1.msra.mxu0 %v572
    %574 = vmatprep.subr.mxu0 0.0
    %v575 = vand.u32 %v111, 4294901760
    %576 = vmatpush1.msra.mxu0 %v575
    %577 = vmatprep.subr.mxu0 0.0
    %578 = vmatpush1.msra.mxu0 0.0
    %579 = vmatprep.subr.mxu0 0.0
    %580 = vmatpush1.msra.mxu0 0.0
    %581 = vmatprep.subr.mxu0 0.0
    %582 = vmatpush1.msra.mxu0 0.0
    %583 = vmatprep.subr.mxu0 0.0
    %584 = vmatpush1.msra.mxu0 0.0
    %585 = vmatprep.subr.mxu0 0.0
    %586 = vmatpush1.msra.mxu0 0.0
    %587 = vmatprep.subr.mxu0 0.0
    %588 = vmatpush1.msra.mxu0 0.0
    %589 = vmatprep.subr.mxu0 0.0
    %590 = vmatpush1.msra.mxu0 0.0
    %591 = vmatprep.subr.mxu0 0.0
    %592 = vmatpush1.msra.mxu0 0.0
    %593 = vmatprep.subr.mxu0 0.0
    %594 = vmatpush1.msra.mxu0 0.0
    %595 = vmatprep.subr.mxu0 0.0
    %596 = vmatpush1.msra.mxu0 0.0
    %597 = vmatprep.subr.mxu0 0.0
    %598 = vmatpush1.msra.mxu0 0.0
    %599 = vmatprep.subr.mxu0 0.0
    %600 = vmatpush1.msra.mxu0 0.0
    %601 = vmatprep.subr.mxu0 0.0
    %602 = vmatpush1.msra.mxu0 0.0
    %603 = vmatprep.subr.mxu0 0.0
    %604 = vmatpush1.msra.mxu0 0.0
    %605 = vmatprep.subr.mxu0 0.0
    %606 = vmatpush1.msra.mxu0 0.0
    %607 = vmatprep.subr.mxu0 0.0
    %608 = vmatpush1.msra.mxu0 0.0
    %609 = vmatprep.subr.mxu0 0.0
    %610 = vmatpush1.msra.mxu0 0.0
    %611 = vmatprep.subr.mxu0 0.0
    %612 = vmatpush1.msra.mxu0 0.0
    %613 = vmatprep.subr.mxu0 0.0
    %614 = vmatpush1.msra.mxu0 0.0
    %615 = vmatprep.subr.mxu0 0.0
    %616 = vmatpush1.msra.mxu0 0.0
    %617 = vmatprep.subr.mxu0 0.0
    %618 = vmatpush1.msra.mxu0 0.0
    %619 = vmatprep.subr.mxu0 0.0
    %620 = vmatpush1.msra.mxu0 0.0
    %621 = vmatprep.subr.mxu0 0.0
    %622 = vmatpush1.msra.mxu0 0.0
    %623 = vmatprep.subr.mxu0 0.0
    %624 = vmatpush1.msra.mxu0 0.0
    %625 = vmatprep.subr.mxu0 0.0
    %626 = vmatpush1.msra.mxu0 0.0
    %627 = vmatprep.subr.mxu0 0.0
    %628 = vmatpush1.msra.mxu0 0.0
    %629 = vmatprep.subr.mxu0 0.0
    %630 = vmatpush1.msra.mxu0 0.0
    %631 = vmatprep.subr.mxu0 0.0
    %632 = vmatpush1.msra.mxu0 0.0
    %633 = vmatprep.mubr.f32.mxu0 0.0
    %v634 = vand.u32 %v113, 4294901760
    %635 = vmatmul.mubr.f32.gmra.mrb[0].mxu0 %v634
    %v636 = vpop.f32.mrb[0].mxu0
    %v637 = vadd.f32 %v556, %v636
    %v638 = vpop.f32.mrb[0].mxu0
    %639 = vmatprep.mubr.f32.mxu0 0.0
    %v640 = vand.u32 %v116, 4294901760
    %641 = vmatmul.mubr.f32.gmra.mrb[0].mxu0 %v640
    %v642 = vpop.f32.mrb[0].mxu0
    %v643 = vadd.f32 %v562, %v642
    %v644 = vpop.f32.mrb[0].mxu0
    %645 = vdwg.mxu0
    %vm646 = vcmask 523264
    %647 = vst.msk [vmem:[#allocation10] sm:$0xff] %vm646, %v637
    %648 = vst.msk [vmem:[#allocation10 + $0x8] sm:$0xff] %vm646, %v643
    %v649 = vld [vmem:[#allocation7] sm:$0xff]
    %v650 = vld [vmem:[#allocation7 + $0x8] sm:$0xff]
    %v651 = vld [vmem:[#allocation7 + $0x10] sm:$0xff]
    %v652 = vld [vmem:[#allocation7 + $0x18] sm:$0xff]
    %653 = vmatprep.subr.mxu0 0.0
    %v654 = vand.u32 %v649, 4294901760
    %655 = vmatpush1.msra.mxu0 %v654
    %656 = vmatprep.subr.mxu0 0.0
    %v657 = vand.u32 %v650, 4294901760
    %658 = vmatpush1.msra.mxu0 %v657
    %659 = vmatprep.subr.mxu0 0.0
    %v660 = vand.u32 %v651, 4294901760
    %661 = vmatpush1.msra.mxu0 %v660
    %662 = vmatprep.subr.mxu0 0.0
    %v663 = vand.u32 %v652, 4294901760
    %664 = vmatpush1.msra.mxu0 %v663
    %665 = vmatprep.subr.mxu0 0.0
    %666 = vmatpush1.msra.mxu0 0.0
    %667 = vmatprep.subr.mxu0 0.0
    %668 = vmatpush1.msra.mxu0 0.0
    %669 = vmatprep.subr.mxu0 0.0
    %670 = vmatpush1.msra.mxu0 0.0
    %671 = vmatprep.subr.mxu0 0.0
    %672 = vmatpush1.msra.mxu0 0.0
    %673 = vmatprep.subr.mxu0 0.0
    %674 = vmatpush1.msra.mxu0 0.0
    %675 = vmatprep.subr.mxu0 0.0
    %676 = vmatpush1.msra.mxu0 0.0
    %677 = vmatprep.subr.mxu0 0.0
    %678 = vmatpush1.msra.mxu0 0.0
    %679 = vmatprep.subr.mxu0 0.0
    %680 = vmatpush1.msra.mxu0 0.0
    %681 = vmatprep.subr.mxu0 0.0
    %682 = vmatpush1.msra.mxu0 0.0
    %683 = vmatprep.subr.mxu0 0.0
    %684 = vmatpush1.msra.mxu0 0.0
    %685 = vmatprep.subr.mxu0 0.0
    %686 = vmatpush1.msra.mxu0 0.0
    %687 = vmatprep.subr.mxu0 0.0
    %688 = vmatpush1.msra.mxu0 0.0
    %689 = vmatprep.subr.mxu0 0.0
    %690 = vmatpush1.msra.mxu0 0.0
    %691 = vmatprep.subr.mxu0 0.0
    %692 = vmatpush1.msra.mxu0 0.0
    %693 = vmatprep.subr.mxu0 0.0
    %694 = vmatpush1.msra.mxu0 0.0
    %695 = vmatprep.subr.mxu0 0.0
    %696 = vmatpush1.msra.mxu0 0.0
    %697 = vmatprep.subr.mxu0 0.0
    %698 = vmatpush1.msra.mxu0 0.0
    %699 = vmatprep.subr.mxu0 0.0
    %700 = vmatpush1.msra.mxu0 0.0
    %701 = vmatprep.subr.mxu0 0.0
    %702 = vmatpush1.msra.mxu0 0.0
    %703 = vmatprep.subr.mxu0 0.0
    %704 = vmatpush1.msra.mxu0 0.0
    %705 = vmatprep.subr.mxu0 0.0
    %706 = vmatpush1.msra.mxu0 0.0
    %707 = vmatprep.subr.mxu0 0.0
    %708 = vmatpush1.msra.mxu0 0.0
    %709 = vmatprep.subr.mxu0 0.0
    %710 = vmatpush1.msra.mxu0 0.0
    %711 = vmatprep.subr.mxu0 0.0
    %712 = vmatpush1.msra.mxu0 0.0
    %713 = vmatprep.subr.mxu0 0.0
    %714 = vmatpush1.msra.mxu0 0.0
    %715 = vmatprep.subr.mxu0 0.0
    %716 = vmatpush1.msra.mxu0 0.0
    %717 = vmatprep.subr.mxu0 0.0
    %718 = vmatpush1.msra.mxu0 0.0
    %719 = vmatprep.subr.mxu0 0.0
    %720 = vmatpush1.msra.mxu0 0.0
    %721 = vmatprep.mubr.f32.mxu0 0.0
    %v722 = vand.u32 %v113, 4294901760
    %v723 = vsub.f32 %v113, %v722
    %v724 = vand.u32 %v723, 4294901760
    %v725 = vsub.f32 %v723, %v724
    %v726 = vand.u32 %v725, 4294901760
    %727 = vmatmul.mubr.f32.gmra.mrb[0].mxu0 %v726
    %v728 = vpop.f32.mrb[0].mxu0
    %v729 = vadd.f32 0.0, %v728
    %v730 = vpop.f32.mrb[0].mxu0
    %731 = vmatprep.mubr.f32.mxu0 0.0
    %v732 = vand.u32 %v116, 4294901760
    %v733 = vsub.f32 %v116, %v732
    %v734 = vand.u32 %v733, 4294901760
    %v735 = vsub.f32 %v733, %v734
    %v736 = vand.u32 %v735, 4294901760
    %737 = vmatmul.mubr.f32.gmra.mrb[0].mxu0 %v736
    %v738 = vpop.f32.mrb[0].mxu0
    %v739 = vadd.f32 0.0, %v738
    %v740 = vpop.f32.mrb[0].mxu0
    %741 = vdwg.mxu0
    %742 = vmatprep.subr.mxu0 0.0
    %v743 = vand.u32 %v649, 4294901760
    %v744 = vsub.f32 %v649, %v743
    %v745 = vand.u32 %v744, 4294901760
    %v746 = vsub.f32 %v744, %v745
    %v747 = vand.u32 %v746, 4294901760
    %748 = vmatpush1.msra.mxu0 %v747
    %749 = vmatprep.subr.mxu0 0.0
    %v750 = vand.u32 %v650, 4294901760
    %v751 = vsub.f32 %v650, %v750
    %v752 = vand.u32 %v751, 4294901760
    %v753 = vsub.f32 %v751, %v752
    %v754 = vand.u32 %v753, 4294901760
    %755 = vmatpush1.msra.mxu0 %v754
    %756 = vmatprep.subr.mxu0 0.0
    %v757 = vand.u32 %v651, 4294901760
    %v758 = vsub.f32 %v651, %v757
    %v759 = vand.u32 %v758, 4294901760
    %v760 = vsub.f32 %v758, %v759
    %v761 = vand.u32 %v760, 4294901760
    %762 = vmatpush1.msra.mxu0 %v761
    %763 = vmatprep.subr.mxu0 0.0
    %v764 = vand.u32 %v652, 4294901760
    %v765 = vsub.f32 %v652, %v764
    %v766 = vand.u32 %v765, 4294901760
    %v767 = vsub.f32 %v765, %v766
    %v768 = vand.u32 %v767, 4294901760
    %769 = vmatpush1.msra.mxu0 %v768
    %770 = vmatprep.subr.mxu0 0.0
    %771 = vmatpush1.msra.mxu0 0.0
    %772 = vmatprep.subr.mxu0 0.0
    %773 = vmatpush1.msra.mxu0 0.0
    %774 = vmatprep.subr.mxu0 0.0
    %775 = vmatpush1.msra.mxu0 0.0
    %776 = vmatprep.subr.mxu0 0.0
    %777 = vmatpush1.msra.mxu0 0.0
    %778 = vmatprep.subr.mxu0 0.0
    %779 = vmatpush1.msra.mxu0 0.0
    %780 = vmatprep.subr.mxu0 0.0
    %781 = vmatpush1.msra.mxu0 0.0
    %782 = vmatprep.subr.mxu0 0.0
    %783 = vmatpush1.msra.mxu0 0.0
    %784 = vmatprep.subr.mxu0 0.0
    %785 = vmatpush1.msra.mxu0 0.0
    %786 = vmatprep.subr.mxu0 0.0
    %787 = vmatpush1.msra.mxu0 0.0
    %788 = vmatprep.subr.mxu0 0.0
    %789 = vmatpush1.msra.mxu0 0.0
    %790 = vmatprep.subr.mxu0 0.0
    %791 = vmatpush1.msra.mxu0 0.0
    %792 = vmatprep.subr.mxu0 0.0
    %793 = vmatpush1.msra.mxu0 0.0
    %794 = vmatprep.subr.mxu0 0.0
    %795 = vmatpush1.msra.mxu0 0.0
    %796 = vmatprep.subr.mxu0 0.0
    %797 = vmatpush1.msra.mxu0 0.0
    %798 = vmatprep.subr.mxu0 0.0
    %799 = vmatpush1.msra.mxu0 0.0
    %800 = vmatprep.subr.mxu0 0.0
    %801 = vmatpush1.msra.mxu0 0.0
    %802 = vmatprep.subr.mxu0 0.0
    %803 = vmatpush1.msra.mxu0 0.0
    %804 = vmatprep.subr.mxu0 0.0
    %805 = vmatpush1.msra.mxu0 0.0
    %806 = vmatprep.subr.mxu0 0.0
    %807 = vmatpush1.msra.mxu0 0.0
    %808 = vmatprep.subr.mxu0 0.0
    %809 = vmatpush1.msra.mxu0 0.0
    %810 = vmatprep.subr.mxu0 0.0
    %811 = vmatpush1.msra.mxu0 0.0
    %812 = vmatprep.subr.mxu0 0.0
    %813 = vmatpush1.msra.mxu0 0.0
    %814 = vmatprep.subr.mxu0 0.0
    %815 = vmatpush1.msra.mxu0 0.0
    %816 = vmatprep.subr.mxu0 0.0
    %817 = vmatpush1.msra.mxu0 0.0
    %818 = vmatprep.subr.mxu0 0.0
    %819 = vmatpush1.msra.mxu0 0.0
    %820 = vmatprep.subr.mxu0 0.0
    %821 = vmatpush1.msra.mxu0 0.0
    %822 = vmatprep.subr.mxu0 0.0
    %823 = vmatpush1.msra.mxu0 0.0
    %824 = vmatprep.subr.mxu0 0.0
    %825 = vmatpush1.msra.mxu0 0.0
    %826 = vmatprep.mubr.f32.mxu0 0.0
    %v827 = vand.u32 %v113, 4294901760
    %828 = vmatmul.mubr.f32.gmra.mrb[0].mxu0 %v827
    %v829 = vpop.f32.mrb[0].mxu0
    %v830 = vadd.f32 %v729, %v829
    %v831 = vpop.f32.mrb[0].mxu0
    %832 = vmatprep.mubr.f32.mxu0 0.0
    %v833 = vand.u32 %v116, 4294901760
    %834 = vmatmul.mubr.f32.gmra.mrb[0].mxu0 %v833
    %v835 = vpop.f32.mrb[0].mxu0
    %v836 = vadd.f32 %v739, %v835
    %v837 = vpop.f32.mrb[0].mxu0
    %838 = vdwg.mxu0
    %839 = vmatprep.subr.mxu0 0.0
    %v840 = vand.u32 %v649, 4294901760
    %v841 = vsub.f32 %v649, %v840
    %842 = vmatpush1.msra.mxu0 %v841
    %843 = vmatprep.subr.mxu0 0.0
    %v844 = vand.u32 %v650, 4294901760
    %v845 = vsub.f32 %v650, %v844
    %846 = vmatpush1.msra.mxu0 %v845
    %847 = vmatprep.subr.mxu0 0.0
    %v848 = vand.u32 %v651, 4294901760
    %v849 = vsub.f32 %v651, %v848
    %850 = vmatpush1.msra.mxu0 %v849
    %851 = vmatprep.subr.mxu0 0.0
    %v852 = vand.u32 %v652, 4294901760
    %v853 = vsub.f32 %v652, %v852
    %854 = vmatpush1.msra.mxu0 %v853
    %855 = vmatprep.subr.mxu0 0.0
    %856 = vmatpush1.msra.mxu0 0.0
    %857 = vmatprep.subr.mxu0 0.0
    %858 = vmatpush1.msra.mxu0 0.0
    %859 = vmatprep.subr.mxu0 0.0
    %860 = vmatpush1.msra.mxu0 0.0
    %861 = vmatprep.subr.mxu0 0.0
    %862 = vmatpush1.msra.mxu0 0.0
    %863 = vmatprep.subr.mxu0 0.0
    %864 = vmatpush1.msra.mxu0 0.0
    %865 = vmatprep.subr.mxu0 0.0
    %866 = vmatpush1.msra.mxu0 0.0
    %867 = vmatprep.subr.mxu0 0.0
    %868 = vmatpush1.msra.mxu0 0.0
    %869 = vmatprep.subr.mxu0 0.0
    %870 = vmatpush1.msra.mxu0 0.0
    %871 = vmatprep.subr.mxu0 0.0
    %872 = vmatpush1.msra.mxu0 0.0
    %873 = vmatprep.subr.mxu0 0.0
    %874 = vmatpush1.msra.mxu0 0.0
    %875 = vmatprep.subr.mxu0 0.0
    %876 = vmatpush1.msra.mxu0 0.0
    %877 = vmatprep.subr.mxu0 0.0
    %878 = vmatpush1.msra.mxu0 0.0
    %879 = vmatprep.subr.mxu0 0.0
    %880 = vmatpush1.msra.mxu0 0.0
    %881 = vmatprep.subr.mxu0 0.0
    %882 = vmatpush1.msra.mxu0 0.0
    %883 = vmatprep.subr.mxu0 0.0
    %884 = vmatpush1.msra.mxu0 0.0
    %885 = vmatprep.subr.mxu0 0.0
    %886 = vmatpush1.msra.mxu0 0.0
    %887 = vmatprep.subr.mxu0 0.0
    %888 = vmatpush1.msra.mxu0 0.0
    %889 = vmatprep.subr.mxu0 0.0
    %890 = vmatpush1.msra.mxu0 0.0
    %891 = vmatprep.subr.mxu0 0.0
    %892 = vmatpush1.msra.mxu0 0.0
    %893 = vmatprep.subr.mxu0 0.0
    %894 = vmatpush1.msra.mxu0 0.0
    %895 = vmatprep.subr.mxu0 0.0
    %896 = vmatpush1.msra.mxu0 0.0
    %897 = vmatprep.subr.mxu0 0.0
    %898 = vmatpush1.msra.mxu0 0.0
    %899 = vmatprep.subr.mxu0 0.0
    %900 = vmatpush1.msra.mxu0 0.0
    %901 = vmatprep.subr.mxu0 0.0
    %902 = vmatpush1.msra.mxu0 0.0
    %903 = vmatprep.subr.mxu0 0.0
    %904 = vmatpush1.msra.mxu0 0.0
    %905 = vmatprep.subr.mxu0 0.0
    %906 = vmatpush1.msra.mxu0 0.0
    %907 = vmatprep.subr.mxu0 0.0
    %908 = vmatpush1.msra.mxu0 0.0
    %909 = vmatprep.subr.mxu0 0.0
    %910 = vmatpush1.msra.mxu0 0.0
    %911 = vmatprep.mubr.f32.mxu0 0.0
    %v912 = vand.u32 %v113, 4294901760
    %v913 = vsub.f32 %v113, %v912
    %914 = vmatmul.mubr.f32.gmra.mrb[0].mxu0 %v913
    %v915 = vpop.f32.mrb[0].mxu0
    %v916 = vadd.f32 %v830, %v915
    %v917 = vpop.f32.mrb[0].mxu0
    %918 = vmatprep.mubr.f32.mxu0 0.0
    %v919 = vand.u32 %v116, 4294901760
    %v920 = vsub.f32 %v116, %v919
    %921 = vmatmul.mubr.f32.gmra.mrb[0].mxu0 %v920
    %v922 = vpop.f32.mrb[0].mxu0
    %v923 = vadd.f32 %v836, %v922
    %v924 = vpop.f32.mrb[0].mxu0
    %925 = vdwg.mxu0
    %926 = vmatprep.subr.mxu0 0.0
    %v927 = vand.u32 %v649, 4294901760
    %928 = vmatpush1.msra.mxu0 %v927
    %929 = vmatprep.subr.mxu0 0.0
    %v930 = vand.u32 %v650, 4294901760
    %931 = vmatpush1.msra.mxu0 %v930
    %932 = vmatprep.subr.mxu0 0.0
    %v933 = vand.u32 %v651, 4294901760
    %934 = vmatpush1.msra.mxu0 %v933
    %935 = vmatprep.subr.mxu0 0.0
    %v936 = vand.u32 %v652, 4294901760
    %937 = vmatpush1.msra.mxu0 %v936
    %938 = vmatprep.subr.mxu0 0.0
    %939 = vmatpush1.msra.mxu0 0.0
    %940 = vmatprep.subr.mxu0 0.0
    %941 = vmatpush1.msra.mxu0 0.0
    %942 = vmatprep.subr.mxu0 0.0
    %943 = vmatpush1.msra.mxu0 0.0
    %944 = vmatprep.subr.mxu0 0.0
    %945 = vmatpush1.msra.mxu0 0.0
    %946 = vmatprep.subr.mxu0 0.0
    %947 = vmatpush1.msra.mxu0 0.0
    %948 = vmatprep.subr.mxu0 0.0
    %949 = vmatpush1.msra.mxu0 0.0
    %950 = vmatprep.subr.mxu0 0.0
    %951 = vmatpush1.msra.mxu0 0.0
    %952 = vmatprep.subr.mxu0 0.0
    %953 = vmatpush1.msra.mxu0 0.0
    %954 = vmatprep.subr.mxu0 0.0
    %955 = vmatpush1.msra.mxu0 0.0
    %956 = vmatprep.subr.mxu0 0.0
    %957 = vmatpush1.msra.mxu0 0.0
    %958 = vmatprep.subr.mxu0 0.0
    %959 = vmatpush1.msra.mxu0 0.0
    %960 = vmatprep.subr.mxu0 0.0
    %961 = vmatpush1.msra.mxu0 0.0
    %962 = vmatprep.subr.mxu0 0.0
    %963 = vmatpush1.msra.mxu0 0.0
    %964 = vmatprep.subr.mxu0 0.0
    %965 = vmatpush1.msra.mxu0 0.0
    %966 = vmatprep.subr.mxu0 0.0
    %967 = vmatpush1.msra.mxu0 0.0
    %968 = vmatprep.subr.mxu0 0.0
    %969 = vmatpush1.msra.mxu0 0.0
    %970 = vmatprep.subr.mxu0 0.0
    %971 = vmatpush1.msra.mxu0 0.0
    %972 = vmatprep.subr.mxu0 0.0
    %973 = vmatpush1.msra.mxu0 0.0
    %974 = vmatprep.subr.mxu0 0.0
    %975 = vmatpush1.msra.mxu0 0.0
    %976 = vmatprep.subr.mxu0 0.0
    %977 = vmatpush1.msra.mxu0 0.0
    %978 = vmatprep.subr.mxu0 0.0
    %979 = vmatpush1.msra.mxu0 0.0
    %980 = vmatprep.subr.mxu0 0.0
    %981 = vmatpush1.msra.mxu0 0.0
    %982 = vmatprep.subr.mxu0 0.0
    %983 = vmatpush1.msra.mxu0 0.0
    %984 = vmatprep.subr.mxu0 0.0
    %985 = vmatpush1.msra.mxu0 0.0
    %986 = vmatprep.subr.mxu0 0.0
    %987 = vmatpush1.msra.mxu0 0.0
    %988 = vmatprep.subr.mxu0 0.0
    %989 = vmatpush1.msra.mxu0 0.0
    %990 = vmatprep.subr.mxu0 0.0
    %991 = vmatpush1.msra.mxu0 0.0
    %992 = vmatprep.subr.mxu0 0.0
    %993 = vmatpush1.msra.mxu0 0.0
    %994 = vmatprep.mubr.f32.mxu0 0.0
    %v995 = vand.u32 %v113, 4294901760
    %v996 = vsub.f32 %v113, %v995
    %v997 = vand.u32 %v996, 4294901760
    %998 = vmatmul.mubr.f32.gmra.mrb[0].mxu0 %v997
    %v999 = vpop.f32.mrb[0].mxu0
    %v1000 = vadd.f32 %v916, %v999
    %v1001 = vpop.f32.mrb[0].mxu0
    %1002 = vmatprep.mubr.f32.mxu0 0.0
    %v1003 = vand.u32 %v116, 4294901760
    %v1004 = vsub.f32 %v116, %v1003
    %v1005 = vand.u32 %v1004, 4294901760
    %1006 = vmatmul.mubr.f32.gmra.mrb[0].mxu0 %v1005
    %v1007 = vpop.f32.mrb[0].mxu0
    %v1008 = vadd.f32 %v923, %v1007
    %v1009 = vpop.f32.mrb[0].mxu0
    %1010 = vdwg.mxu0
    %1011 = vmatprep.subr.mxu0 0.0
    %v1012 = vand.u32 %v649, 4294901760
    %v1013 = vsub.f32 %v649, %v1012
    %v1014 = vand.u32 %v1013, 4294901760
    %1015 = vmatpush1.msra.mxu0 %v1014
    %1016 = vmatprep.subr.mxu0 0.0
    %v1017 = vand.u32 %v650, 4294901760
    %v1018 = vsub.f32 %v650, %v1017
    %v1019 = vand.u32 %v1018, 4294901760
    %1020 = vmatpush1.msra.mxu0 %v1019
    %1021 = vmatprep.subr.mxu0 0.0
    %v1022 = vand.u32 %v651, 4294901760
    %v1023 = vsub.f32 %v651, %v1022
    %v1024 = vand.u32 %v1023, 4294901760
    %1025 = vmatpush1.msra.mxu0 %v1024
    %1026 = vmatprep.subr.mxu0 0.0
    %v1027 = vand.u32 %v652, 4294901760
    %v1028 = vsub.f32 %v652, %v1027
    %v1029 = vand.u32 %v1028, 4294901760
    %1030 = vmatpush1.msra.mxu0 %v1029
    %1031 = vmatprep.subr.mxu0 0.0
    %1032 = vmatpush1.msra.mxu0 0.0
    %1033 = vmatprep.subr.mxu0 0.0
    %1034 = vmatpush1.msra.mxu0 0.0
    %1035 = vmatprep.subr.mxu0 0.0
    %1036 = vmatpush1.msra.mxu0 0.0
    %1037 = vmatprep.subr.mxu0 0.0
    %1038 = vmatpush1.msra.mxu0 0.0
    %1039 = vmatprep.subr.mxu0 0.0
    %1040 = vmatpush1.msra.mxu0 0.0
    %1041 = vmatprep.subr.mxu0 0.0
    %1042 = vmatpush1.msra.mxu0 0.0
    %1043 = vmatprep.subr.mxu0 0.0
    %1044 = vmatpush1.msra.mxu0 0.0
    %1045 = vmatprep.subr.mxu0 0.0
    %1046 = vmatpush1.msra.mxu0 0.0
    %1047 = vmatprep.subr.mxu0 0.0
    %1048 = vmatpush1.msra.mxu0 0.0
    %1049 = vmatprep.subr.mxu0 0.0
    %1050 = vmatpush1.msra.mxu0 0.0
    %1051 = vmatprep.subr.mxu0 0.0
    %1052 = vmatpush1.msra.mxu0 0.0
    %1053 = vmatprep.subr.mxu0 0.0
    %1054 = vmatpush1.msra.mxu0 0.0
    %1055 = vmatprep.subr.mxu0 0.0
    %1056 = vmatpush1.msra.mxu0 0.0
    %1057 = vmatprep.subr.mxu0 0.0
    %1058 = vmatpush1.msra.mxu0 0.0
    %1059 = vmatprep.subr.mxu0 0.0
    %1060 = vmatpush1.msra.mxu0 0.0
    %1061 = vmatprep.subr.mxu0 0.0
    %1062 = vmatpush1.msra.mxu0 0.0
    %1063 = vmatprep.subr.mxu0 0.0
    %1064 = vmatpush1.msra.mxu0 0.0
    %1065 = vmatprep.subr.mxu0 0.0
    %1066 = vmatpush1.msra.mxu0 0.0
    %1067 = vmatprep.subr.mxu0 0.0
    %1068 = vmatpush1.msra.mxu0 0.0
    %1069 = vmatprep.subr.mxu0 0.0
    %1070 = vmatpush1.msra.mxu0 0.0
    %1071 = vmatprep.subr.mxu0 0.0
    %1072 = vmatpush1.msra.mxu0 0.0
    %1073 = vmatprep.subr.mxu0 0.0
    %1074 = vmatpush1.msra.mxu0 0.0
    %1075 = vmatprep.subr.mxu0 0.0
    %1076 = vmatpush1.msra.mxu0 0.0
    %1077 = vmatprep.subr.mxu0 0.0
    %1078 = vmatpush1.msra.mxu0 0.0
    %1079 = vmatprep.subr.mxu0 0.0
    %1080 = vmatpush1.msra.mxu0 0.0
    %1081 = vmatprep.subr.mxu0 0.0
    %1082 = vmatpush1.msra.mxu0 0.0
    %1083 = vmatprep.subr.mxu0 0.0
    %1084 = vmatpush1.msra.mxu0 0.0
    %1085 = vmatprep.subr.mxu0 0.0
    %1086 = vmatpush1.msra.mxu0 0.0
    %1087 = vmatprep.mubr.f32.mxu0 0.0
    %v1088 = vand.u32 %v113, 4294901760
    %1089 = vmatmul.mubr.f32.gmra.mrb[0].mxu0 %v1088
    %v1090 = vpop.f32.mrb[0].mxu0
    %v1091 = vadd.f32 %v1000, %v1090
    %v1092 = vpop.f32.mrb[0].mxu0
    %1093 = vmatprep.mubr.f32.mxu0 0.0
    %v1094 = vand.u32 %v116, 4294901760
    %1095 = vmatmul.mubr.f32.gmra.mrb[0].mxu0 %v1094
    %v1096 = vpop.f32.mrb[0].mxu0
    %v1097 = vadd.f32 %v1008, %v1096
    %v1098 = vpop.f32.mrb[0].mxu0
    %1099 = vdwg.mxu0
    %1100 = vmatprep.subr.mxu0 0.0
    %v1101 = vand.u32 %v649, 4294901760
    %1102 = vmatpush1.msra.mxu0 %v1101
    %1103 = vmatprep.subr.mxu0 0.0
    %v1104 = vand.u32 %v650, 4294901760
    %1105 = vmatpush1.msra.mxu0 %v1104
    %1106 = vmatprep.subr.mxu0 0.0
    %v1107 = vand.u32 %v651, 4294901760
    %1108 = vmatpush1.msra.mxu0 %v1107
    %1109 = vmatprep.subr.mxu0 0.0
    %v1110 = vand.u32 %v652, 4294901760
    %1111 = vmatpush1.msra.mxu0 %v1110
    %1112 = vmatprep.subr.mxu0 0.0
    %1113 = vmatpush1.msra.mxu0 0.0
    %1114 = vmatprep.subr.mxu0 0.0
    %1115 = vmatpush1.msra.mxu0 0.0
    %1116 = vmatprep.subr.mxu0 0.0
    %1117 = vmatpush1.msra.mxu0 0.0
    %1118 = vmatprep.subr.mxu0 0.0
    %1119 = vmatpush1.msra.mxu0 0.0
    %1120 = vmatprep.subr.mxu0 0.0
    %1121 = vmatpush1.msra.mxu0 0.0
    %1122 = vmatprep.subr.mxu0 0.0
    %1123 = vmatpush1.msra.mxu0 0.0
    %1124 = vmatprep.subr.mxu0 0.0
    %1125 = vmatpush1.msra.mxu0 0.0
    %1126 = vmatprep.subr.mxu0 0.0
    %1127 = vmatpush1.msra.mxu0 0.0
    %1128 = vmatprep.subr.mxu0 0.0
    %1129 = vmatpush1.msra.mxu0 0.0
    %1130 = vmatprep.subr.mxu0 0.0
    %1131 = vmatpush1.msra.mxu0 0.0
    %1132 = vmatprep.subr.mxu0 0.0
    %1133 = vmatpush1.msra.mxu0 0.0
    %1134 = vmatprep.subr.mxu0 0.0
    %1135 = vmatpush1.msra.mxu0 0.0
    %1136 = vmatprep.subr.mxu0 0.0
    %1137 = vmatpush1.msra.mxu0 0.0
    %1138 = vmatprep.subr.mxu0 0.0
    %1139 = vmatpush1.msra.mxu0 0.0
    %1140 = vmatprep.subr.mxu0 0.0
    %1141 = vmatpush1.msra.mxu0 0.0
    %1142 = vmatprep.subr.mxu0 0.0
    %1143 = vmatpush1.msra.mxu0 0.0
    %1144 = vmatprep.subr.mxu0 0.0
    %1145 = vmatpush1.msra.mxu0 0.0
    %1146 = vmatprep.subr.mxu0 0.0
    %1147 = vmatpush1.msra.mxu0 0.0
    %1148 = vmatprep.subr.mxu0 0.0
    %1149 = vmatpush1.msra.mxu0 0.0
    %1150 = vmatprep.subr.mxu0 0.0
    %1151 = vmatpush1.msra.mxu0 0.0
    %1152 = vmatprep.subr.mxu0 0.0
    %1153 = vmatpush1.msra.mxu0 0.0
    %1154 = vmatprep.subr.mxu0 0.0
    %1155 = vmatpush1.msra.mxu0 0.0
    %1156 = vmatprep.subr.mxu0 0.0
    %1157 = vmatpush1.msra.mxu0 0.0
    %1158 = vmatprep.subr.mxu0 0.0
    %1159 = vmatpush1.msra.mxu0 0.0
    %1160 = vmatprep.subr.mxu0 0.0
    %1161 = vmatpush1.msra.mxu0 0.0
    %1162 = vmatprep.subr.mxu0 0.0
    %1163 = vmatpush1.msra.mxu0 0.0
    %1164 = vmatprep.subr.mxu0 0.0
    %1165 = vmatpush1.msra.mxu0 0.0
    %1166 = vmatprep.subr.mxu0 0.0
    %1167 = vmatpush1.msra.mxu0 0.0
    %1168 = vmatprep.mubr.f32.mxu0 0.0
    %v1169 = vand.u32 %v113, 4294901760
    %1170 = vmatmul.mubr.f32.gmra.mrb[0].mxu0 %v1169
    %v1171 = vpop.f32.mrb[0].mxu0
    %v1172 = vadd.f32 %v1091, %v1171
    %v1173 = vpop.f32.mrb[0].mxu0
    %1174 = vmatprep.mubr.f32.mxu0 0.0
    %v1175 = vand.u32 %v116, 4294901760
    %1176 = vmatmul.mubr.f32.gmra.mrb[0].mxu0 %v1175
    %v1177 = vpop.f32.mrb[0].mxu0
    %v1178 = vadd.f32 %v1097, %v1177
    %v1179 = vpop.f32.mrb[0].mxu0
    %1180 = vdwg.mxu0
    %1181 = vst.msk [vmem:[#allocation11] sm:$0xff] %vm84, %v1172
    %1182 = vst.msk [vmem:[#allocation11 + $0x8] sm:$0xff] %vm84, %v1178
    %v1183 = vld [vmem:[#allocation8] sm:$0xff]
    %v1184 = vld [vmem:[#allocation8 + $0x8] sm:$0xff]
    %v1185 = vld [vmem:[#allocation8 + $0x10] sm:$0xff]
    %v1186 = vld [vmem:[#allocation8 + $0x18] sm:$0xff]
    %1187 = vmatprep.subr.mxu0 0.0
    %v1188 = vand.u32 %v1183, 4294901760
    %1189 = vmatpush1.msra.mxu0 %v1188
    %1190 = vmatprep.subr.mxu0 0.0
    %v1191 = vand.u32 %v1184, 4294901760
    %1192 = vmatpush1.msra.mxu0 %v1191
    %1193 = vmatprep.subr.mxu0 0.0
    %v1194 = vand.u32 %v1185, 4294901760
    %1195 = vmatpush1.msra.mxu0 %v1194
    %1196 = vmatprep.subr.mxu0 0.0
    %v1197 = vand.u32 %v1186, 4294901760
    %1198 = vmatpush1.msra.mxu0 %v1197
    %1199 = vmatprep.subr.mxu0 0.0
    %1200 = vmatpush1.msra.mxu0 0.0
    %1201 = vmatprep.subr.mxu0 0.0
    %1202 = vmatpush1.msra.mxu0 0.0
    %1203 = vmatprep.subr.mxu0 0.0
    %1204 = vmatpush1.msra.mxu0 0.0
    %1205 = vmatprep.subr.mxu0 0.0
    %1206 = vmatpush1.msra.mxu0 0.0
    %1207 = vmatprep.subr.mxu0 0.0
    %1208 = vmatpush1.msra.mxu0 0.0
    %1209 = vmatprep.subr.mxu0 0.0
    %1210 = vmatpush1.msra.mxu0 0.0
    %1211 = vmatprep.subr.mxu0 0.0
    %1212 = vmatpush1.msra.mxu0 0.0
    %1213 = vmatprep.subr.mxu0 0.0
    %1214 = vmatpush1.msra.mxu0 0.0
    %1215 = vmatprep.subr.mxu0 0.0
    %1216 = vmatpush1.msra.mxu0 0.0
    %1217 = vmatprep.subr.mxu0 0.0
    %1218 = vmatpush1.msra.mxu0 0.0
    %1219 = vmatprep.subr.mxu0 0.0
    %1220 = vmatpush1.msra.mxu0 0.0
    %1221 = vmatprep.subr.mxu0 0.0
    %1222 = vmatpush1.msra.mxu0 0.0
    %1223 = vmatprep.subr.mxu0 0.0
    %1224 = vmatpush1.msra.mxu0 0.0
    %1225 = vmatprep.subr.mxu0 0.0
    %1226 = vmatpush1.msra.mxu0 0.0
    %1227 = vmatprep.subr.mxu0 0.0
    %1228 = vmatpush1.msra.mxu0 0.0
    %1229 = vmatprep.subr.mxu0 0.0
    %1230 = vmatpush1.msra.mxu0 0.0
    %1231 = vmatprep.subr.mxu0 0.0
    %1232 = vmatpush1.msra.mxu0 0.0
    %1233 = vmatprep.subr.mxu0 0.0
    %1234 = vmatpush1.msra.mxu0 0.0
    %1235 = vmatprep.subr.mxu0 0.0
    %1236 = vmatpush1.msra.mxu0 0.0
    %1237 = vmatprep.subr.mxu0 0.0
    %1238 = vmatpush1.msra.mxu0 0.0
    %1239 = vmatprep.subr.mxu0 0.0
    %1240 = vmatpush1.msra.mxu0 0.0
    %1241 = vmatprep.subr.mxu0 0.0
    %1242 = vmatpush1.msra.mxu0 0.0
    %1243 = vmatprep.subr.mxu0 0.0
    %1244 = vmatpush1.msra.mxu0 0.0
    %1245 = vmatprep.subr.mxu0 0.0
    %1246 = vmatpush1.msra.mxu0 0.0
    %1247 = vmatprep.subr.mxu0 0.0
    %1248 = vmatpush1.msra.mxu0 0.0
    %1249 = vmatprep.subr.mxu0 0.0
    %1250 = vmatpush1.msra.mxu0 0.0
    %1251 = vmatprep.subr.mxu0 0.0
    %1252 = vmatpush1.msra.mxu0 0.0
    %1253 = vmatprep.subr.mxu0 0.0
    %1254 = vmatpush1.msra.mxu0 0.0
    %1255 = vmatprep.mubr.f32.mxu0 0.0
    %v1256 = vand.u32 %v113, 4294901760
    %v1257 = vsub.f32 %v113, %v1256
    %v1258 = vand.u32 %v1257, 4294901760
    %v1259 = vsub.f32 %v1257, %v1258
    %v1260 = vand.u32 %v1259, 4294901760
    %1261 = vmatmul.mubr.f32.gmra.mrb[0].mxu0 %v1260
    %v1262 = vpop.f32.mrb[0].mxu0
    %v1263 = vadd.f32 0.0, %v1262
    %v1264 = vpop.f32.mrb[0].mxu0
    %1265 = vmatprep.mubr.f32.mxu0 0.0
    %v1266 = vand.u32 %v116, 4294901760
    %v1267 = vsub.f32 %v116, %v1266
    %v1268 = vand.u32 %v1267, 4294901760
    %v1269 = vsub.f32 %v1267, %v1268
    %v1270 = vand.u32 %v1269, 4294901760
    %1271 = vmatmul.mubr.f32.gmra.mrb[0].mxu0 %v1270
    %v1272 = vpop.f32.mrb[0].mxu0
    %v1273 = vadd.f32 0.0, %v1272
    %v1274 = vpop.f32.mrb[0].mxu0
    %1275 = vdwg.mxu0
    %1276 = vmatprep.subr.mxu0 0.0
    %v1277 = vand.u32 %v1183, 4294901760
    %v1278 = vsub.f32 %v1183, %v1277
    %v1279 = vand.u32 %v1278, 4294901760
    %v1280 = vsub.f32 %v1278, %v1279
    %v1281 = vand.u32 %v1280, 4294901760
    %1282 = vmatpush1.msra.mxu0 %v1281
    %1283 = vmatprep.subr.mxu0 0.0
    %v1284 = vand.u32 %v1184, 4294901760
    %v1285 = vsub.f32 %v1184, %v1284
    %v1286 = vand.u32 %v1285, 4294901760
    %v1287 = vsub.f32 %v1285, %v1286
    %v1288 = vand.u32 %v1287, 4294901760
    %1289 = vmatpush1.msra.mxu0 %v1288
    %1290 = vmatprep.subr.mxu0 0.0
    %v1291 = vand.u32 %v1185, 4294901760
    %v1292 = vsub.f32 %v1185, %v1291
    %v1293 = vand.u32 %v1292, 4294901760
    %v1294 = vsub.f32 %v1292, %v1293
    %v1295 = vand.u32 %v1294, 4294901760
    %1296 = vmatpush1.msra.mxu0 %v1295
    %1297 = vmatprep.subr.mxu0 0.0
    %v1298 = vand.u32 %v1186, 4294901760
    %v1299 = vsub.f32 %v1186, %v1298
    %v1300 = vand.u32 %v1299, 4294901760
    %v1301 = vsub.f32 %v1299, %v1300
    %v1302 = vand.u32 %v1301, 4294901760
    %1303 = vmatpush1.msra.mxu0 %v1302
    %1304 = vmatprep.subr.mxu0 0.0
    %1305 = vmatpush1.msra.mxu0 0.0
    %1306 = vmatprep.subr.mxu0 0.0
    %1307 = vmatpush1.msra.mxu0 0.0
    %1308 = vmatprep.subr.mxu0 0.0
    %1309 = vmatpush1.msra.mxu0 0.0
    %1310 = vmatprep.subr.mxu0 0.0
    %1311 = vmatpush1.msra.mxu0 0.0
    %1312 = vmatprep.subr.mxu0 0.0
    %1313 = vmatpush1.msra.mxu0 0.0
    %1314 = vmatprep.subr.mxu0 0.0
    %1315 = vmatpush1.msra.mxu0 0.0
    %1316 = vmatprep.subr.mxu0 0.0
    %1317 = vmatpush1.msra.mxu0 0.0
    %1318 = vmatprep.subr.mxu0 0.0
    %1319 = vmatpush1.msra.mxu0 0.0
    %1320 = vmatprep.subr.mxu0 0.0
    %1321 = vmatpush1.msra.mxu0 0.0
    %1322 = vmatprep.subr.mxu0 0.0
    %1323 = vmatpush1.msra.mxu0 0.0
    %1324 = vmatprep.subr.mxu0 0.0
    %1325 = vmatpush1.msra.mxu0 0.0
    %1326 = vmatprep.subr.mxu0 0.0
    %1327 = vmatpush1.msra.mxu0 0.0
    %1328 = vmatprep.subr.mxu0 0.0
    %1329 = vmatpush1.msra.mxu0 0.0
    %1330 = vmatprep.subr.mxu0 0.0
    %1331 = vmatpush1.msra.mxu0 0.0
    %1332 = vmatprep.subr.mxu0 0.0
    %1333 = vmatpush1.msra.mxu0 0.0
    %1334 = vmatprep.subr.mxu0 0.0
    %1335 = vmatpush1.msra.mxu0 0.0
    %1336 = vmatprep.subr.mxu0 0.0
    %1337 = vmatpush1.msra.mxu0 0.0
    %1338 = vmatprep.subr.mxu0 0.0
    %1339 = vmatpush1.msra.mxu0 0.0
    %1340 = vmatprep.subr.mxu0 0.0
    %1341 = vmatpush1.msra.mxu0 0.0
    %1342 = vmatprep.subr.mxu0 0.0
    %1343 = vmatpush1.msra.mxu0 0.0
    %1344 = vmatprep.subr.mxu0 0.0
    %1345 = vmatpush1.msra.mxu0 0.0
    %1346 = vmatprep.subr.mxu0 0.0
    %1347 = vmatpush1.msra.mxu0 0.0
    %1348 = vmatprep.subr.mxu0 0.0
    %1349 = vmatpush1.msra.mxu0 0.0
    %1350 = vmatprep.subr.mxu0 0.0
    %1351 = vmatpush1.msra.mxu0 0.0
    %1352 = vmatprep.subr.mxu0 0.0
    %1353 = vmatpush1.msra.mxu0 0.0
    %1354 = vmatprep.subr.mxu0 0.0
    %1355 = vmatpush1.msra.mxu0 0.0
    %1356 = vmatprep.subr.mxu0 0.0
    %1357 = vmatpush1.msra.mxu0 0.0
    %1358 = vmatprep.subr.mxu0 0.0
    %1359 = vmatpush1.msra.mxu0 0.0
    %1360 = vmatprep.mubr.f32.mxu0 0.0
    %v1361 = vand.u32 %v113, 4294901760
    %1362 = vmatmul.mubr.f32.gmra.mrb[0].mxu0 %v1361
    %v1363 = vpop.f32.mrb[0].mxu0
    %v1364 = vadd.f32 %v1263, %v1363
    %v1365 = vpop.f32.mrb[0].mxu0
    %1366 = vmatprep.mubr.f32.mxu0 0.0
    %v1367 = vand.u32 %v116, 4294901760
    %1368 = vmatmul.mubr.f32.gmra.mrb[0].mxu0 %v1367
    %v1369 = vpop.f32.mrb[0].mxu0
    %v1370 = vadd.f32 %v1273, %v1369
    %v1371 = vpop.f32.mrb[0].mxu0
    %1372 = vdwg.mxu0
    %1373 = vmatprep.subr.mxu0 0.0
    %v1374 = vand.u32 %v1183, 4294901760
    %v1375 = vsub.f32 %v1183, %v1374
    %1376 = vmatpush1.msra.mxu0 %v1375
    %1377 = vmatprep.subr.mxu0 0.0
    %v1378 = vand.u32 %v1184, 4294901760
    %v1379 = vsub.f32 %v1184, %v1378
    %1380 = vmatpush1.msra.mxu0 %v1379
    %1381 = vmatprep.subr.mxu0 0.0
    %v1382 = vand.u32 %v1185, 4294901760
    %v1383 = vsub.f32 %v1185, %v1382
    %1384 = vmatpush1.msra.mxu0 %v1383
    %1385 = vmatprep.subr.mxu0 0.0
    %v1386 = vand.u32 %v1186, 4294901760
    %v1387 = vsub.f32 %v1186, %v1386
    %1388 = vmatpush1.msra.mxu0 %v1387
    %1389 = vmatprep.subr.mxu0 0.0
    %1390 = vmatpush1.msra.mxu0 0.0
    %1391 = vmatprep.subr.mxu0 0.0
    %1392 = vmatpush1.msra.mxu0 0.0
    %1393 = vmatprep.subr.mxu0 0.0
    %1394 = vmatpush1.msra.mxu0 0.0
    %1395 = vmatprep.subr.mxu0 0.0
    %1396 = vmatpush1.msra.mxu0 0.0
    %1397 = vmatprep.subr.mxu0 0.0
    %1398 = vmatpush1.msra.mxu0 0.0
    %1399 = vmatprep.subr.mxu0 0.0
    %1400 = vmatpush1.msra.mxu0 0.0
    %1401 = vmatprep.subr.mxu0 0.0
    %1402 = vmatpush1.msra.mxu0 0.0
    %1403 = vmatprep.subr.mxu0 0.0
    %1404 = vmatpush1.msra.mxu0 0.0
    %1405 = vmatprep.subr.mxu0 0.0
    %1406 = vmatpush1.msra.mxu0 0.0
    %1407 = vmatprep.subr.mxu0 0.0
    %1408 = vmatpush1.msra.mxu0 0.0
    %1409 = vmatprep.subr.mxu0 0.0
    %1410 = vmatpush1.msra.mxu0 0.0
    %1411 = vmatprep.subr.mxu0 0.0
    %1412 = vmatpush1.msra.mxu0 0.0
    %1413 = vmatprep.subr.mxu0 0.0
    %1414 = vmatpush1.msra.mxu0 0.0
    %1415 = vmatprep.subr.mxu0 0.0
    %1416 = vmatpush1.msra.mxu0 0.0
    %1417 = vmatprep.subr.mxu0 0.0
    %1418 = vmatpush1.msra.mxu0 0.0
    %1419 = vmatprep.subr.mxu0 0.0
    %1420 = vmatpush1.msra.mxu0 0.0
    %1421 = vmatprep.subr.mxu0 0.0
    %1422 = vmatpush1.msra.mxu0 0.0
    %1423 = vmatprep.subr.mxu0 0.0
    %1424 = vmatpush1.msra.mxu0 0.0
    %1425 = vmatprep.subr.mxu0 0.0
    %1426 = vmatpush1.msra.mxu0 0.0
    %1427 = vmatprep.subr.mxu0 0.0
    %1428 = vmatpush1.msra.mxu0 0.0
    %1429 = vmatprep.subr.mxu0 0.0
    %1430 = vmatpush1.msra.mxu0 0.0
    %1431 = vmatprep.subr.mxu0 0.0
    %1432 = vmatpush1.msra.mxu0 0.0
    %1433 = vmatprep.subr.mxu0 0.0
    %1434 = vmatpush1.msra.mxu0 0.0
    %1435 = vmatprep.subr.mxu0 0.0
    %1436 = vmatpush1.msra.mxu0 0.0
    %1437 = vmatprep.subr.mxu0 0.0
    %1438 = vmatpush1.msra.mxu0 0.0
    %1439 = vmatprep.subr.mxu0 0.0
    %1440 = vmatpush1.msra.mxu0 0.0
    %1441 = vmatprep.subr.mxu0 0.0
    %1442 = vmatpush1.msra.mxu0 0.0
    %1443 = vmatprep.subr.mxu0 0.0
    %1444 = vmatpush1.msra.mxu0 0.0
    %1445 = vmatprep.mubr.f32.mxu0 0.0
    %v1446 = vand.u32 %v113, 4294901760
    %v1447 = vsub.f32 %v113, %v1446
    %1448 = vmatmul.mubr.f32.gmra.mrb[0].mxu0 %v1447
    %v1449 = vpop.f32.mrb[0].mxu0
    %v1450 = vadd.f32 %v1364, %v1449
    %v1451 = vpop.f32.mrb[0].mxu0
    %1452 = vmatprep.mubr.f32.mxu0 0.0
    %v1453 = vand.u32 %v116, 4294901760
    %v1454 = vsub.f32 %v116, %v1453
    %1455 = vmatmul.mubr.f32.gmra.mrb[0].mxu0 %v1454
    %v1456 = vpop.f32.mrb[0].mxu0
    %v1457 = vadd.f32 %v1370, %v1456
    %v1458 = vpop.f32.mrb[0].mxu0
    %1459 = vdwg.mxu0
    %1460 = vmatprep.subr.mxu0 0.0
    %v1461 = vand.u32 %v1183, 4294901760
    %1462 = vmatpush1.msra.mxu0 %v1461
    %1463 = vmatprep.subr.mxu0 0.0
    %v1464 = vand.u32 %v1184, 4294901760
    %1465 = vmatpush1.msra.mxu0 %v1464
    %1466 = vmatprep.subr.mxu0 0.0
    %v1467 = vand.u32 %v1185, 4294901760
    %1468 = vmatpush1.msra.mxu0 %v1467
    %1469 = vmatprep.subr.mxu0 0.0
    %v1470 = vand.u32 %v1186, 4294901760
    %1471 = vmatpush1.msra.mxu0 %v1470
    %1472 = vmatprep.subr.mxu0 0.0
    %1473 = vmatpush1.msra.mxu0 0.0
    %1474 = vmatprep.subr.mxu0 0.0
    %1475 = vmatpush1.msra.mxu0 0.0
    %1476 = vmatprep.subr.mxu0 0.0
    %1477 = vmatpush1.msra.mxu0 0.0
    %1478 = vmatprep.subr.mxu0 0.0
    %1479 = vmatpush1.msra.mxu0 0.0
    %1480 = vmatprep.subr.mxu0 0.0
    %1481 = vmatpush1.msra.mxu0 0.0
    %1482 = vmatprep.subr.mxu0 0.0
    %1483 = vmatpush1.msra.mxu0 0.0
    %1484 = vmatprep.subr.mxu0 0.0
    %1485 = vmatpush1.msra.mxu0 0.0
    %1486 = vmatprep.subr.mxu0 0.0
    %1487 = vmatpush1.msra.mxu0 0.0
    %1488 = vmatprep.subr.mxu0 0.0
    %1489 = vmatpush1.msra.mxu0 0.0
    %1490 = vmatprep.subr.mxu0 0.0
    %1491 = vmatpush1.msra.mxu0 0.0
    %1492 = vmatprep.subr.mxu0 0.0
    %1493 = vmatpush1.msra.mxu0 0.0
    %1494 = vmatprep.subr.mxu0 0.0
    %1495 = vmatpush1.msra.mxu0 0.0
    %1496 = vmatprep.subr.mxu0 0.0
    %1497 = vmatpush1.msra.mxu0 0.0
    %1498 = vmatprep.subr.mxu0 0.0
    %1499 = vmatpush1.msra.mxu0 0.0
    %1500 = vmatprep.subr.mxu0 0.0
    %1501 = vmatpush1.msra.mxu0 0.0
    %1502 = vmatprep.subr.mxu0 0.0
    %1503 = vmatpush1.msra.mxu0 0.0
    %1504 = vmatprep.subr.mxu0 0.0
    %1505 = vmatpush1.msra.mxu0 0.0
    %1506 = vmatprep.subr.mxu0 0.0
    %1507 = vmatpush1.msra.mxu0 0.0
    %1508 = vmatprep.subr.mxu0 0.0
    %1509 = vmatpush1.msra.mxu0 0.0
    %1510 = vmatprep.subr.mxu0 0.0
    %1511 = vmatpush1.msra.mxu0 0.0
    %1512 = vmatprep.subr.mxu0 0.0
    %1513 = vmatpush1.msra.mxu0 0.0
    %1514 = vmatprep.subr.mxu0 0.0
    %1515 = vmatpush1.msra.mxu0 0.0
    %1516 = vmatprep.subr.mxu0 0.0
    %1517 = vmatpush1.msra.mxu0 0.0
    %1518 = vmatprep.subr.mxu0 0.0
    %1519 = vmatpush1.msra.mxu0 0.0
    %1520 = vmatprep.subr.mxu0 0.0
    %1521 = vmatpush1.msra.mxu0 0.0
    %1522 = vmatprep.subr.mxu0 0.0
    %1523 = vmatpush1.msra.mxu0 0.0
    %1524 = vmatprep.subr.mxu0 0.0
    %1525 = vmatpush1.msra.mxu0 0.0
    %1526 = vmatprep.subr.mxu0 0.0
    %1527 = vmatpush1.msra.mxu0 0.0
    %1528 = vmatprep.mubr.f32.mxu0 0.0
    %v1529 = vand.u32 %v113, 4294901760
    %v1530 = vsub.f32 %v113, %v1529
    %v1531 = vand.u32 %v1530, 4294901760
    %1532 = vmatmul.mubr.f32.gmra.mrb[0].mxu0 %v1531
    %v1533 = vpop.f32.mrb[0].mxu0
    %v1534 = vadd.f32 %v1450, %v1533
    %v1535 = vpop.f32.mrb[0].mxu0
    %1536 = vmatprep.mubr.f32.mxu0 0.0
    %v1537 = vand.u32 %v116, 4294901760
    %v1538 = vsub.f32 %v116, %v1537
    %v1539 = vand.u32 %v1538, 4294901760
    %1540 = vmatmul.mubr.f32.gmra.mrb[0].mxu0 %v1539
    %v1541 = vpop.f32.mrb[0].mxu0
    %v1542 = vadd.f32 %v1457, %v1541
    %v1543 = vpop.f32.mrb[0].mxu0
    %1544 = vdwg.mxu0
    %1545 = vmatprep.subr.mxu0 0.0
    %v1546 = vand.u32 %v1183, 4294901760
    %v1547 = vsub.f32 %v1183, %v1546
    %v1548 = vand.u32 %v1547, 4294901760
    %1549 = vmatpush1.msra.mxu0 %v1548
    %1550 = vmatprep.subr.mxu0 0.0
    %v1551 = vand.u32 %v1184, 4294901760
    %v1552 = vsub.f32 %v1184, %v1551
    %v1553 = vand.u32 %v1552, 4294901760
    %1554 = vmatpush1.msra.mxu0 %v1553
    %1555 = vmatprep.subr.mxu0 0.0
    %v1556 = vand.u32 %v1185, 4294901760
    %v1557 = vsub.f32 %v1185, %v1556
    %v1558 = vand.u32 %v1557, 4294901760
    %1559 = vmatpush1.msra.mxu0 %v1558
    %1560 = vmatprep.subr.mxu0 0.0
    %v1561 = vand.u32 %v1186, 4294901760
    %v1562 = vsub.f32 %v1186, %v1561
    %v1563 = vand.u32 %v1562, 4294901760
    %1564 = vmatpush1.msra.mxu0 %v1563
    %1565 = vmatprep.subr.mxu0 0.0
    %1566 = vmatpush1.msra.mxu0 0.0
    %1567 = vmatprep.subr.mxu0 0.0
    %1568 = vmatpush1.msra.mxu0 0.0
    %1569 = vmatprep.subr.mxu0 0.0
    %1570 = vmatpush1.msra.mxu0 0.0
    %1571 = vmatprep.subr.mxu0 0.0
    %1572 = vmatpush1.msra.mxu0 0.0
    %1573 = vmatprep.subr.mxu0 0.0
    %1574 = vmatpush1.msra.mxu0 0.0
    %1575 = vmatprep.subr.mxu0 0.0
    %1576 = vmatpush1.msra.mxu0 0.0
    %1577 = vmatprep.subr.mxu0 0.0
    %1578 = vmatpush1.msra.mxu0 0.0
    %1579 = vmatprep.subr.mxu0 0.0
    %1580 = vmatpush1.msra.mxu0 0.0
    %1581 = vmatprep.subr.mxu0 0.0
    %1582 = vmatpush1.msra.mxu0 0.0
    %1583 = vmatprep.subr.mxu0 0.0
    %1584 = vmatpush1.msra.mxu0 0.0
    %1585 = vmatprep.subr.mxu0 0.0
    %1586 = vmatpush1.msra.mxu0 0.0
    %1587 = vmatprep.subr.mxu0 0.0
    %1588 = vmatpush1.msra.mxu0 0.0
    %1589 = vmatprep.subr.mxu0 0.0
    %1590 = vmatpush1.msra.mxu0 0.0
    %1591 = vmatprep.subr.mxu0 0.0
    %1592 = vmatpush1.msra.mxu0 0.0
    %1593 = vmatprep.subr.mxu0 0.0
    %1594 = vmatpush1.msra.mxu0 0.0
    %1595 = vmatprep.subr.mxu0 0.0
    %1596 = vmatpush1.msra.mxu0 0.0
    %1597 = vmatprep.subr.mxu0 0.0
    %1598 = vmatpush1.msra.mxu0 0.0
    %1599 = vmatprep.subr.mxu0 0.0
    %1600 = vmatpush1.msra.mxu0 0.0
    %1601 = vmatprep.subr.mxu0 0.0
    %1602 = vmatpush1.msra.mxu0 0.0
    %1603 = vmatprep.subr.mxu0 0.0
    %1604 = vmatpush1.msra.mxu0 0.0
    %1605 = vmatprep.subr.mxu0 0.0
    %1606 = vmatpush1.msra.mxu0 0.0
    %1607 = vmatprep.subr.mxu0 0.0
    %1608 = vmatpush1.msra.mxu0 0.0
    %1609 = vmatprep.subr.mxu0 0.0
    %1610 = vmatpush1.msra.mxu0 0.0
    %1611 = vmatprep.subr.mxu0 0.0
    %1612 = vmatpush1.msra.mxu0 0.0
    %1613 = vmatprep.subr.mxu0 0.0
    %1614 = vmatpush1.msra.mxu0 0.0
    %1615 = vmatprep.subr.mxu0 0.0
    %1616 = vmatpush1.msra.mxu0 0.0
    %1617 = vmatprep.subr.mxu0 0.0
    %1618 = vmatpush1.msra.mxu0 0.0
    %1619 = vmatprep.subr.mxu0 0.0
    %1620 = vmatpush1.msra.mxu0 0.0
    %1621 = vmatprep.mubr.f32.mxu0 0.0
    %v1622 = vand.u32 %v113, 4294901760
    %1623 = vmatmul.mubr.f32.gmra.mrb[0].mxu0 %v1622
    %v1624 = vpop.f32.mrb[0].mxu0
    %v1625 = vadd.f32 %v1534, %v1624
    %v1626 = vpop.f32.mrb[0].mxu0
    %1627 = vmatprep.mubr.f32.mxu0 0.0
    %v1628 = vand.u32 %v116, 4294901760
    %1629 = vmatmul.mubr.f32.gmra.mrb[0].mxu0 %v1628
    %v1630 = vpop.f32.mrb[0].mxu0
    %v1631 = vadd.f32 %v1542, %v1630
    %v1632 = vpop.f32.mrb[0].mxu0
    %1633 = vdwg.mxu0
    %1634 = vmatprep.subr.mxu0 0.0
    %v1635 = vand.u32 %v1183, 4294901760
    %1636 = vmatpush1.msra.mxu0 %v1635
    %1637 = vmatprep.subr.mxu0 0.0
    %v1638 = vand.u32 %v1184, 4294901760
    %1639 = vmatpush1.msra.mxu0 %v1638
    %1640 = vmatprep.subr.mxu0 0.0
    %v1641 = vand.u32 %v1185, 4294901760
    %1642 = vmatpush1.msra.mxu0 %v1641
    %1643 = vmatprep.subr.mxu0 0.0
    %v1644 = vand.u32 %v1186, 4294901760
    %1645 = vmatpush1.msra.mxu0 %v1644
    %1646 = vmatprep.subr.mxu0 0.0
    %1647 = vmatpush1.msra.mxu0 0.0
    %1648 = vmatprep.subr.mxu0 0.0
    %1649 = vmatpush1.msra.mxu0 0.0
    %1650 = vmatprep.subr.mxu0 0.0
    %1651 = vmatpush1.msra.mxu0 0.0
    %1652 = vmatprep.subr.mxu0 0.0
    %1653 = vmatpush1.msra.mxu0 0.0
    %1654 = vmatprep.subr.mxu0 0.0
    %1655 = vmatpush1.msra.mxu0 0.0
    %1656 = vmatprep.subr.mxu0 0.0
    %1657 = vmatpush1.msra.mxu0 0.0
    %1658 = vmatprep.subr.mxu0 0.0
    %1659 = vmatpush1.msra.mxu0 0.0
    %1660 = vmatprep.subr.mxu0 0.0
    %1661 = vmatpush1.msra.mxu0 0.0
    %1662 = vmatprep.subr.mxu0 0.0
    %1663 = vmatpush1.msra.mxu0 0.0
    %1664 = vmatprep.subr.mxu0 0.0
    %1665 = vmatpush1.msra.mxu0 0.0
    %1666 = vmatprep.subr.mxu0 0.0
    %1667 = vmatpush1.msra.mxu0 0.0
    %1668 = vmatprep.subr.mxu0 0.0
    %1669 = vmatpush1.msra.mxu0 0.0
    %1670 = vmatprep.subr.mxu0 0.0
    %1671 = vmatpush1.msra.mxu0 0.0
    %1672 = vmatprep.subr.mxu0 0.0
    %1673 = vmatpush1.msra.mxu0 0.0
    %1674 = vmatprep.subr.mxu0 0.0
    %1675 = vmatpush1.msra.mxu0 0.0
    %1676 = vmatprep.subr.mxu0 0.0
    %1677 = vmatpush1.msra.mxu0 0.0
    %1678 = vmatprep.subr.mxu0 0.0
    %1679 = vmatpush1.msra.mxu0 0.0
    %1680 = vmatprep.subr.mxu0 0.0
    %1681 = vmatpush1.msra.mxu0 0.0
    %1682 = vmatprep.subr.mxu0 0.0
    %1683 = vmatpush1.msra.mxu0 0.0
    %1684 = vmatprep.subr.mxu0 0.0
    %1685 = vmatpush1.msra.mxu0 0.0
    %1686 = vmatprep.subr.mxu0 0.0
    %1687 = vmatpush1.msra.mxu0 0.0
    %1688 = vmatprep.subr.mxu0 0.0
    %1689 = vmatpush1.msra.mxu0 0.0
    %1690 = vmatprep.subr.mxu0 0.0
    %1691 = vmatpush1.msra.mxu0 0.0
    %1692 = vmatprep.subr.mxu0 0.0
    %1693 = vmatpush1.msra.mxu0 0.0
    %1694 = vmatprep.subr.mxu0 0.0
    %1695 = vmatpush1.msra.mxu0 0.0
    %1696 = vmatprep.subr.mxu0 0.0
    %1697 = vmatpush1.msra.mxu0 0.0
    %1698 = vmatprep.subr.mxu0 0.0
    %1699 = vmatpush1.msra.mxu0 0.0
    %1700 = vmatprep.subr.mxu0 0.0
    %1701 = vmatpush1.msra.mxu0 0.0
    %1702 = vmatprep.mubr.f32.mxu0 0.0
    %v1703 = vand.u32 %v113, 4294901760
    %1704 = vmatmul.mubr.f32.gmra.mrb[0].mxu0 %v1703
    %v1705 = vpop.f32.mrb[0].mxu0
    %v1706 = vadd.f32 %v1625, %v1705
    %v1707 = vpop.f32.mrb[0].mxu0
    %1708 = vmatprep.mubr.f32.mxu0 0.0
    %v1709 = vand.u32 %v116, 4294901760
    %1710 = vmatmul.mubr.f32.gmra.mrb[0].mxu0 %v1709
    %v1711 = vpop.f32.mrb[0].mxu0
    %v1712 = vadd.f32 %v1631, %v1711
    %v1713 = vpop.f32.mrb[0].mxu0
    %1714 = vdwg.mxu0
    %1715 = vst.msk [vmem:[#allocation13] sm:$0xff] %vm84, %v1706
    %1716 = vst.msk [vmem:[#allocation13 + $0x8] sm:$0xff] %vm84, %v1712
    // Predicated region
    $region38: #{tpu_custom_call.1} parent=1 // pred_check
      _
    $region39: #{tpu_custom_call.1} parent=1 // pred_check_branch
      %1718 = sbr.rel (0) target = $region41
    $region40: #{tpu_custom_call.1} parent=1 // pred_region
      %s1720 = ssub.s32 256, 256
      %1721 = vsyncadd [#allocation4], %s1720
      %s1722 = sshll.u32 [#allocation10], 4
      %s1723 = int_to_ptr.vmem [resolvable:$true] %s1722
      %1728 = dma.vmem_to_hbm [thread:$0]  %s1723, 256, %s5, [#allocation4], 128, 128, 8
    $region41: #{tpu_custom_call.1} parent=1 // pred_fallthru
      _
    // Predicated region
    $region42: #{tpu_custom_call.1} parent=1 // pred_check
      _
    $region43: #{tpu_custom_call.1} parent=1 // pred_check_branch
      %1730 = sbr.rel (0) target = $region45
    $region44: #{tpu_custom_call.1} parent=1 // pred_region
      %s1732 = ssub.s32 256, 256
      %1733 = vsyncadd [#allocation12], %s1732
      %s1734 = sshll.u32 [#allocation11], 4
      %s1735 = int_to_ptr.vmem [resolvable:$true] %s1734
      %1740 = dma.vmem_to_hbm [thread:$0]  %s1735, 256, %s6, [#allocation12], 128, 128, 8
    $region45: #{tpu_custom_call.1} parent=1 // pred_fallthru
      _
    // Predicated region
    $region46: #{tpu_custom_call.1} parent=1 // pred_check
      _
    $region47: #{tpu_custom_call.1} parent=1 // pred_check_branch
      %1742 = sbr.rel (0) target = $region49
    $region48: #{tpu_custom_call.1} parent=1 // pred_region
      %s1744 = ssub.s32 256, 256
      %1745 = vsyncadd [#allocation12], %s1744
      %s1746 = sshll.u32 [#allocation13], 4
      %s1747 = int_to_ptr.vmem [resolvable:$true] %s1746
      %1752 = dma.vmem_to_hbm [thread:$0]  %s1747, 256, %s7, [#allocation12], 128, 128, 8
    $region49: #{tpu_custom_call.1} parent=1 // pred_fallthru
      _
    // Predicated region
    $region50: #{tpu_custom_call.1} parent=1 // pred_check
      _
    $region51: #{tpu_custom_call.1} parent=1 // pred_check_branch
      %1754 = sbr.rel (0) target = $region53
    $region52: #{tpu_custom_call.1} parent=1 // pred_region
      %1755 = dma.done [#allocation4], 256
    $region53: #{tpu_custom_call.1} parent=1 // pred_fallthru
      _
    // Predicated region
    $region54: #{tpu_custom_call.1} parent=1 // pred_check
      _
    $region55: #{tpu_custom_call.1} parent=1 // pred_check_branch
      %1757 = sbr.rel (0) target = $region57
    $region56: #{tpu_custom_call.1} parent=1 // pred_region
      %1758 = dma.done [#allocation12], 256
    $region57: #{tpu_custom_call.1} parent=1 // pred_fallthru
      _
    // Predicated region
    $region58: #{tpu_custom_call.1} parent=1 // pred_check
      _
    $region59: #{tpu_custom_call.1} parent=1 // pred_check_branch
      %1760 = sbr.rel (0) target = $region61
    $region60: #{tpu_custom_call.1} parent=1 // pred_region
      %1761 = dma.done [#allocation12], 256
    $region61: #{tpu_custom_call.1} parent=1 // pred_fallthru
      _
    %1762 = vsyncpa [#allocation3], 1
    %1763 = vsyncpa [#allocation6], 1
    %1764 = vsyncpa [#allocation9], 1
    %1765 = vsyncpa [#allocation4], 1
    %1766 = vsyncpa [#allocation12], 1

</llo_original>
